<compile_context>
chip_gen: v5e
topology: v5e:2x2
jax: 0.10.0
libtpu: 0.0.40
codegen_flags: <defaults>
</compile_context>

<pallas_src>
import functools
import math

import jax
import jax.numpy as jnp
from jax import lax
from jax.experimental import pallas as pl
from jax.experimental.pallas import tpu as pltpu

H_STEP = 0.1     # args.h
FEAT = 3         # real feature count of x / speed / output
FPAD = 8         # sublane-aligned feature padding (row FEAT of x holds constant 1)
CHUNK = 128      # lane chunk size: bounds vreg live ranges of the activations


def rk4_kernel(x_ref, s_ref, w1_ref, w2_ref, b2_ref, w3_ref, b3_ref, o_ref,
               *, h, cpb):
    # Weights stay VMEM-resident across the grid (constant index_map).
    w1 = w1_ref[...]      # (128, 32)  b1 folded into column FEAT (const-1 row)
    w2 = w2_ref[...]      # (256, 128)
    b2 = b2_ref[...]      # (256, 1)
    w3 = w3_ref[...]      # (8, 256)   rows FEAT..7 are zero
    b3 = b3_ref[...]      # (8, 1)     rows FEAT..7 are zero

    def mlp(z):
        # First-layer bias arrives through the constant-1 sublane row of z.
        h1 = jnp.maximum(jnp.dot(w1, z, preferred_element_type=jnp.float32), 0.0)
        h2 = jnp.maximum(
            jnp.dot(w2, h1, preferred_element_type=jnp.float32) + b2, 0.0)
        return jnp.dot(w3, h2, preferred_element_type=jnp.float32) + b3

    def f(xx, kk):
        # process_data: cat(x, x^2, x^3, k) along features (sublanes).
        x2 = xx * xx
        x3 = x2 * xx
        z = jnp.concatenate((xx, x2, x3, kk), axis=0)   # (32, CHUNK), vreg-aligned
        return mlp(z)

    def rk4_chunk(xx, ss):
        k1 = f(xx, ss)
        k2 = f(xx + (h * 0.5) * k1, 2.0 * k1)
        k3 = f(xx + (h * 0.5) * k2, 2.0 * k2)
        k4 = f(xx + h * k3, k3)
        return xx + (h / 6.0) * (k1 + 2.0 * (k2 + k3) + k4)

    if cpb == 1:
        o_ref[0] = rk4_chunk(x_ref[0], s_ref[0])
    else:
        # Inner lane-chunk loop: bounds h1/h2 live ranges to 16/32 vregs.
        # unroll=2 puts two independent chunk chains in one basic block so the
        # scheduler can fill MXU bubbles of the serial 12-matmul chain.
        def body(j, carry):
            o_ref[j] = rk4_chunk(x_ref[j], s_ref[j])
            return carry

        lax.fori_loop(0, cpb, body, 0, unroll=2 if cpb % 2 == 0 else 1)


def _choose_chunks_per_block(nc, max_batch_tile):
    """Chunks-per-block so the 1-D grid has an even count >= 2 (v7x: 2 TCs)."""
    if nc <= 1:
        return 1
    max_cpb = max(1, max_batch_tile // CHUNK)
    n = 2
    while pl.cdiv(nc, n) > max_cpb:
        n += 2
    cpb = pl.cdiv(nc, n)
    # Prefer an even cpb (clean unroll-by-2) when it does not change the grid.
    if cpb % 2 and cpb + 1 <= max_cpb and pl.cdiv(nc, cpb + 1) == pl.cdiv(nc, cpb):
        cpb += 1
    return cpb


def rk4_forward(x, speed, kparams, h=H_STEP, max_batch_tile=1024):
    """x, speed: (B, 3) f32 -> (B, 3) f32 (same semantics as the torch module)."""
    B = x.shape[0]
    w1p, w2t, b2c, w3p, b3p = kparams

    nc = pl.cdiv(B, CHUNK)                       # number of 128-lane batch chunks
    cpb = _choose_chunks_per_block(nc, max_batch_tile)
    grid_n = pl.cdiv(nc, cpb)
    nc_pad = grid_n * cpb
    bp = nc_pad * CHUNK

    # Wrapper-side layout plumbing: feature-on-sublane, batch-on-lane, batch
    # zero-padded to bp and split into (nc_pad, 8, 128) chunk slabs so the
    # kernel indexes chunks on the leading (untiled) axis.  Row FEAT of x is
    # the constant 1 that applies b1 through W1p.
    # TODO(synk): keep this slab layout across calls for multi-step ODE rollouts.
    xt = jnp.zeros((FPAD, bp), jnp.float32)
    xt = xt.at[:FEAT, :B].set(x.T)
    xt = xt.at[FEAT, :B].set(1.0)
    st = jnp.zeros((FPAD, bp), jnp.float32).at[:FEAT, :B].set(speed.T)
    xt = xt.reshape(FPAD, nc_pad, CHUNK).transpose(1, 0, 2)
    st = st.reshape(FPAD, nc_pad, CHUNK).transpose(1, 0, 2)

    chunk_spec = pl.BlockSpec((cpb, FPAD, CHUNK), lambda i: (i, 0, 0))

    def const_spec(shape):
        # Same block every grid step -> weights stay resident in VMEM.
        return pl.BlockSpec(shape, lambda i: (0, 0))

    n_weight_elems = 128 * 32 + 256 * 128 + 256 + FPAD * 256 + FPAD
    cost = pl.CostEstimate(
        flops=8 * (32 * 128 + 128 * 256 + 256 * FPAD) * bp,  # 2 * 4 RK4 stages
        transcendentals=0,
        bytes_accessed=4 * (3 * FPAD * bp + n_weight_elems),
    )

    kernel = functools.partial(rk4_kernel, h=float(h), cpb=cpb)
    out_c = pl.pallas_call(
        kernel,
        out_shape=jax.ShapeDtypeStruct((nc_pad, FPAD, CHUNK), jnp.float32),
        grid=(grid_n,),
        in_specs=[
            chunk_spec, chunk_spec,
            const_spec((128, 4 * FPAD)),
            const_spec((256, 128)), const_spec((256, 1)),
            const_spec((FPAD, 256)), const_spec((FPAD, 1)),
        ],
        out_specs=chunk_spec,
        compiler_params=pltpu.CompilerParams(
            dimension_semantics=("parallel",)),
        cost_estimate=cost,
    )(xt, st, w1p, w2t, b2c, w3p, b3p)

    # (nc_pad, 8, 128) -> (B, 3)
    out = out_c[:, :FEAT, :].transpose(0, 2, 1).reshape(bp, FEAT)
    return out[:B]


def init_params(key):
    """Deterministic init mimicking nn.Linear default (uniform +/- 1/sqrt(fan_in))."""
    ks = jax.random.split(key, 6)

    def lin(kw, kb, fan_in, fan_out):
        bound = 1.0 / math.sqrt(fan_in)
        w = jax.random.uniform(kw, (fan_in, fan_out), jnp.float32, -bound, bound)
        b = jax.random.uniform(kb, (fan_out,), jnp.float32, -bound, bound)
        return w, b

    w1, b1 = lin(ks[0], ks[1], 12, 128)    # (12, 128), (128,)
    w2, b2 = lin(ks[2], ks[3], 128, 256)   # (128, 256), (256,)
    w3, b3 = lin(ks[4], ks[5], 256, 3)     # (256, 3),  (3,)
    full = (w1, b1, w2, b2, w3, b3)        # reference layout: z @ w + b

    # Kernel layout: (out, in) weights, feature groups padded 3 -> 8; b1 lives
    # in W1p column FEAT and is applied by the constant-1 x row (the x^2 / x^3
    # pad columns stay zero so the constant row contributes b1 exactly once).
    w1t = w1.T                                              # (128, 12)
    w1p = jnp.zeros((128, 4 * FPAD), jnp.float32)
    for g in range(4):                                      # x, x^2, x^3, k groups
        w1p = w1p.at[:, g * FPAD:g * FPAD + FEAT].set(
            w1t[:, g * FEAT:(g + 1) * FEAT])
    w1p = w1p.at[:, FEAT].set(b1)
    w2t = w2.T                                              # (256, 128)
    b2c = b2.reshape(256, 1)
    w3p = jnp.zeros((FPAD, 256), jnp.float32).at[:FEAT, :].set(w3.T)
    b3p = jnp.zeros((FPAD, 1), jnp.float32).at[:FEAT, 0].set(b3)

    kparams = (w1p, w2t, b2c, w3p, b3p)
    return kparams, full


def rk4_reference(x, speed, full_params, h=H_STEP):
    """Pure-JAX reference matching the PyTorch module semantics exactly."""
    w1, b1, w2, b2, w3, b3 = full_params

    def mlp(z):
        h1 = jnp.maximum(z @ w1 + b1, 0.0)
        h2 = jnp.maximum(h1 @ w2 + b2, 0.0)
        return h2 @ w3 + b3

    def f(xx, kk):
        z = jnp.concatenate((xx, xx ** 2, xx ** 3, kk), axis=1)
        return mlp(z)

    k1 = f(x, speed)
    k2 = f(x + h / 2 * k1, 2 * k1)
    k3 = f(x + h / 2 * k2, 2 * k2)
    k4 = f(x + h * k3, k3)
    return x + h / 6 * (k1 + 2 * k2 + 2 * k3 + k4)


if __name__ == "__main__":
    key = jax.random.PRNGKey(0)
    k_params, k_data = jax.random.split(key, 2)

    kparams, full_params = init_params(k_params)

    # B=8 exercises the single-block path; B=640 exercises the tiled path
    # (grid of 2 blocks, 4 chunks per block, inner loop unrolled by 2).
    for B in (8, 640):
        k_x, k_s, k_data = jax.random.split(k_data, 3)
        x = jax.random.normal(k_x, (B, FEAT), jnp.float32)
        speed = jax.random.normal(k_s, (B, FEAT), jnp.float32)

        out = jax.block_until_ready(rk4_forward(x, speed, kparams, H_STEP))
        ref = rk4_reference(x, speed, full_params, H_STEP)

        assert out.shape == (B, FEAT)
        max_err = float(jnp.max(jnp.abs(out - ref)))
        # Tolerance covers default-precision MXU matmuls (shared with the
        # reference) plus the bias-fold into the first matmul.
        assert jnp.allclose(out, ref, atol=2e-4, rtol=2e-4), (B, max_err)

    print("KERNEL_OK")
</pallas_src>

<mosaic_0001>
module attributes {stable_mosaic.version = 11 : i64} {
  func.func @rk4_kernel(%arg0: i32, %arg1: memref<1x8x128xf32, #tpu.memory_space<vmem>>, %arg2: memref<1x8x128xf32, #tpu.memory_space<vmem>>, %arg3: memref<128x32xf32, #tpu.memory_space<vmem>>, %arg4: memref<256x128xf32, #tpu.memory_space<vmem>>, %arg5: memref<256x1xf32, #tpu.memory_space<vmem>>, %arg6: memref<8x256xf32, #tpu.memory_space<vmem>>, %arg7: memref<8x1xf32, #tpu.memory_space<vmem>>, %arg8: memref<1x8x128xf32, #tpu.memory_space<vmem>>) attributes {dimension_semantics = [#tpu.dimension_semantics<parallel>], iteration_bounds = array<i64: 1>, scalar_prefetch = 0 : i64, scratch_operands = 0 : i64, tpu.core_type = #tpu.core_type<tc>, window_params = [{transform_indices = @transform_0, window_bounds = array<i64: 1, 8, 128>}, {transform_indices = @transform_1, window_bounds = array<i64: 1, 8, 128>}, {pipeline_mode = #tpu.pipeline_mode<synchronous>, transform_indices = @transform_2, window_bounds = array<i64: 128, 32>}, {pipeline_mode = #tpu.pipeline_mode<synchronous>, transform_indices = @transform_3, window_bounds = array<i64: 256, 128>}, {pipeline_mode = #tpu.pipeline_mode<synchronous>, transform_indices = @transform_4, window_bounds = array<i64: 256, 1>}, {pipeline_mode = #tpu.pipeline_mode<synchronous>, transform_indices = @transform_5, window_bounds = array<i64: 8, 256>}, {pipeline_mode = #tpu.pipeline_mode<synchronous>, transform_indices = @transform_6, window_bounds = array<i64: 8, 1>}, {transform_indices = @transform_7, window_bounds = array<i64: 1, 8, 128>}]} {
    %c0 = arith.constant 0 : index
    %c0_0 = arith.constant 0 : index
    %0 = vector.load %arg3[%c0, %c0_0] : memref<128x32xf32, #tpu.memory_space<vmem>>, vector<128x32xf32>
    %c0_1 = arith.constant 0 : index
    %c0_2 = arith.constant 0 : index
    %1 = vector.load %arg4[%c0_1, %c0_2] : memref<256x128xf32, #tpu.memory_space<vmem>>, vector<256x128xf32>
    %c0_3 = arith.constant 0 : index
    %c0_4 = arith.constant 0 : index
    %2 = vector.load %arg5[%c0_3, %c0_4] : memref<256x1xf32, #tpu.memory_space<vmem>>, vector<256x1xf32>
    %c0_5 = arith.constant 0 : index
    %c0_6 = arith.constant 0 : index
    %3 = vector.load %arg6[%c0_5, %c0_6] : memref<8x256xf32, #tpu.memory_space<vmem>>, vector<8x256xf32>
    %c0_7 = arith.constant 0 : index
    %c0_8 = arith.constant 0 : index
    %4 = vector.load %arg7[%c0_7, %c0_8] : memref<8x1xf32, #tpu.memory_space<vmem>>, vector<8x1xf32>
    %c0_9 = arith.constant 0 : index
    %c0_10 = arith.constant 0 : index
    %c0_11 = arith.constant 0 : index
    %5 = vector.load %arg1[%c0_9, %c0_10, %c0_11] : memref<1x8x128xf32, #tpu.memory_space<vmem>>, vector<1x8x128xf32>
    %6 = vector.shape_cast %5 : vector<1x8x128xf32> to vector<8x128xf32>
    %c0_12 = arith.constant 0 : index
    %c0_13 = arith.constant 0 : index
    %c0_14 = arith.constant 0 : index
    %7 = vector.load %arg2[%c0_12, %c0_13, %c0_14] : memref<1x8x128xf32, #tpu.memory_space<vmem>>, vector<1x8x128xf32>
    %8 = vector.shape_cast %7 : vector<1x8x128xf32> to vector<8x128xf32>
    %9 = arith.mulf %6, %6 : vector<8x128xf32>
    %10 = arith.mulf %9, %6 : vector<8x128xf32>
    %11 = tpu.concatenate %6, %9, %10, %8 in 0 : vector<8x128xf32>, vector<8x128xf32>, vector<8x128xf32>, vector<8x128xf32> -> vector<32x128xf32>
    %cst = arith.constant dense<0.000000e+00> : vector<128x128xf32>
    %12 = tpu.matmul %0, %11, %cst {dimension_numbers = #tpu.dot_dimension_numbers<[1], [0], [0], [1], [0, 0, 1, 1], [], []>} : vector<128x32xf32>, vector<32x128xf32>, vector<128x128xf32> -> vector<128x128xf32>
    %cst_15 = arith.constant 0.000000e+00 : f32
    %13 = vector.broadcast %cst_15 : f32 to vector<128x128xf32>
    %14 = arith.maximumf %12, %13 : vector<128x128xf32>
    %cst_16 = arith.constant dense<0.000000e+00> : vector<256x128xf32>
    %15 = tpu.matmul %1, %14, %cst_16 {dimension_numbers = #tpu.dot_dimension_numbers<[1], [0], [0], [1], [0, 0, 1, 1], [], []>} : vector<256x128xf32>, vector<128x128xf32>, vector<256x128xf32> -> vector<256x128xf32>
    %16 = vector.broadcast %2 : vector<256x1xf32> to vector<256x128xf32>
    %17 = arith.addf %15, %16 : vector<256x128xf32>
    %cst_17 = arith.constant 0.000000e+00 : f32
    %18 = vector.broadcast %cst_17 : f32 to vector<256x128xf32>
    %19 = arith.maximumf %17, %18 : vector<256x128xf32>
    %cst_18 = arith.constant dense<0.000000e+00> : vector<8x128xf32>
    %20 = tpu.matmul %3, %19, %cst_18 {dimension_numbers = #tpu.dot_dimension_numbers<[1], [0], [0], [1], [0, 0, 1, 1], [], []>} : vector<8x256xf32>, vector<256x128xf32>, vector<8x128xf32> -> vector<8x128xf32>
    %21 = vector.broadcast %4 : vector<8x1xf32> to vector<8x128xf32>
    %22 = arith.addf %20, %21 : vector<8x128xf32>
    %cst_19 = arith.constant 5.000000e-02 : f32
    %23 = vector.broadcast %cst_19 : f32 to vector<8x128xf32>
    %24 = arith.mulf %23, %22 : vector<8x128xf32>
    %25 = arith.addf %6, %24 : vector<8x128xf32>
    %cst_20 = arith.constant 2.000000e+00 : f32
    %26 = vector.broadcast %cst_20 : f32 to vector<8x128xf32>
    %27 = arith.mulf %26, %22 : vector<8x128xf32>
    %28 = arith.mulf %25, %25 : vector<8x128xf32>
    %29 = arith.mulf %28, %25 : vector<8x128xf32>
    %30 = tpu.concatenate %25, %28, %29, %27 in 0 : vector<8x128xf32>, vector<8x128xf32>, vector<8x128xf32>, vector<8x128xf32> -> vector<32x128xf32>
    %cst_21 = arith.constant dense<0.000000e+00> : vector<128x128xf32>
    %31 = tpu.matmul %0, %30, %cst_21 {dimension_numbers = #tpu.dot_dimension_numbers<[1], [0], [0], [1], [0, 0, 1, 1], [], []>} : vector<128x32xf32>, vector<32x128xf32>, vector<128x128xf32> -> vector<128x128xf32>
    %cst_22 = arith.constant 0.000000e+00 : f32
    %32 = vector.broadcast %cst_22 : f32 to vector<128x128xf32>
    %33 = arith.maximumf %31, %32 : vector<128x128xf32>
    %cst_23 = arith.constant dense<0.000000e+00> : vector<256x128xf32>
    %34 = tpu.matmul %1, %33, %cst_23 {dimension_numbers = #tpu.dot_dimension_numbers<[1], [0], [0], [1], [0, 0, 1, 1], [], []>} : vector<256x128xf32>, vector<128x128xf32>, vector<256x128xf32> -> vector<256x128xf32>
    %35 = vector.broadcast %2 : vector<256x1xf32> to vector<256x128xf32>
    %36 = arith.addf %34, %35 : vector<256x128xf32>
    %cst_24 = arith.constant 0.000000e+00 : f32
    %37 = vector.broadcast %cst_24 : f32 to vector<256x128xf32>
    %38 = arith.maximumf %36, %37 : vector<256x128xf32>
    %cst_25 = arith.constant dense<0.000000e+00> : vector<8x128xf32>
    %39 = tpu.matmul %3, %38, %cst_25 {dimension_numbers = #tpu.dot_dimension_numbers<[1], [0], [0], [1], [0, 0, 1, 1], [], []>} : vector<8x256xf32>, vector<256x128xf32>, vector<8x128xf32> -> vector<8x128xf32>
    %40 = vector.broadcast %4 : vector<8x1xf32> to vector<8x128xf32>
    %41 = arith.addf %39, %40 : vector<8x128xf32>
    %cst_26 = arith.constant 5.000000e-02 : f32
    %42 = vector.broadcast %cst_26 : f32 to vector<8x128xf32>
    %43 = arith.mulf %42, %41 : vector<8x128xf32>
    %44 = arith.addf %6, %43 : vector<8x128xf32>
    %cst_27 = arith.constant 2.000000e+00 : f32
    %45 = vector.broadcast %cst_27 : f32 to vector<8x128xf32>
    %46 = arith.mulf %45, %41 : vector<8x128xf32>
    %47 = arith.mulf %44, %44 : vector<8x128xf32>
    %48 = arith.mulf %47, %44 : vector<8x128xf32>
    %49 = tpu.concatenate %44, %47, %48, %46 in 0 : vector<8x128xf32>, vector<8x128xf32>, vector<8x128xf32>, vector<8x128xf32> -> vector<32x128xf32>
    %cst_28 = arith.constant dense<0.000000e+00> : vector<128x128xf32>
    %50 = tpu.matmul %0, %49, %cst_28 {dimension_numbers = #tpu.dot_dimension_numbers<[1], [0], [0], [1], [0, 0, 1, 1], [], []>} : vector<128x32xf32>, vector<32x128xf32>, vector<128x128xf32> -> vector<128x128xf32>
    %cst_29 = arith.constant 0.000000e+00 : f32
    %51 = vector.broadcast %cst_29 : f32 to vector<128x128xf32>
    %52 = arith.maximumf %50, %51 : vector<128x128xf32>
    %cst_30 = arith.constant dense<0.000000e+00> : vector<256x128xf32>
    %53 = tpu.matmul %1, %52, %cst_30 {dimension_numbers = #tpu.dot_dimension_numbers<[1], [0], [0], [1], [0, 0, 1, 1], [], []>} : vector<256x128xf32>, vector<128x128xf32>, vector<256x128xf32> -> vector<256x128xf32>
    %54 = vector.broadcast %2 : vector<256x1xf32> to vector<256x128xf32>
    %55 = arith.addf %53, %54 : vector<256x128xf32>
    %cst_31 = arith.constant 0.000000e+00 : f32
    %56 = vector.broadcast %cst_31 : f32 to vector<256x128xf32>
    %57 = arith.maximumf %55, %56 : vector<256x128xf32>
    %cst_32 = arith.constant dense<0.000000e+00> : vector<8x128xf32>
    %58 = tpu.matmul %3, %57, %cst_32 {dimension_numbers = #tpu.dot_dimension_numbers<[1], [0], [0], [1], [0, 0, 1, 1], [], []>} : vector<8x256xf32>, vector<256x128xf32>, vector<8x128xf32> -> vector<8x128xf32>
    %59 = vector.broadcast %4 : vector<8x1xf32> to vector<8x128xf32>
    %60 = arith.addf %58, %59 : vector<8x128xf32>
    %cst_33 = arith.constant 1.000000e-01 : f32
    %61 = vector.broadcast %cst_33 : f32 to vector<8x128xf32>
    %62 = arith.mulf %61, %60 : vector<8x128xf32>
    %63 = arith.addf %6, %62 : vector<8x128xf32>
    %64 = arith.mulf %63, %63 : vector<8x128xf32>
    %65 = arith.mulf %64, %63 : vector<8x128xf32>
    %66 = tpu.concatenate %63, %64, %65, %60 in 0 : vector<8x128xf32>, vector<8x128xf32>, vector<8x128xf32>, vector<8x128xf32> -> vector<32x128xf32>
    %cst_34 = arith.constant dense<0.000000e+00> : vector<128x128xf32>
    %67 = tpu.matmul %0, %66, %cst_34 {dimension_numbers = #tpu.dot_dimension_numbers<[1], [0], [0], [1], [0, 0, 1, 1], [], []>} : vector<128x32xf32>, vector<32x128xf32>, vector<128x128xf32> -> vector<128x128xf32>
    %cst_35 = arith.constant 0.000000e+00 : f32
    %68 = vector.broadcast %cst_35 : f32 to vector<128x128xf32>
    %69 = arith.maximumf %67, %68 : vector<128x128xf32>
    %cst_36 = arith.constant dense<0.000000e+00> : vector<256x128xf32>
    %70 = tpu.matmul %1, %69, %cst_36 {dimension_numbers = #tpu.dot_dimension_numbers<[1], [0], [0], [1], [0, 0, 1, 1], [], []>} : vector<256x128xf32>, vector<128x128xf32>, vector<256x128xf32> -> vector<256x128xf32>
    %71 = vector.broadcast %2 : vector<256x1xf32> to vector<256x128xf32>
    %72 = arith.addf %70, %71 : vector<256x128xf32>
    %cst_37 = arith.constant 0.000000e+00 : f32
    %73 = vector.broadcast %cst_37 : f32 to vector<256x128xf32>
    %74 = arith.maximumf %72, %73 : vector<256x128xf32>
    %cst_38 = arith.constant dense<0.000000e+00> : vector<8x128xf32>
    %75 = tpu.matmul %3, %74, %cst_38 {dimension_numbers = #tpu.dot_dimension_numbers<[1], [0], [0], [1], [0, 0, 1, 1], [], []>} : vector<8x256xf32>, vector<256x128xf32>, vector<8x128xf32> -> vector<8x128xf32>
    %76 = vector.broadcast %4 : vector<8x1xf32> to vector<8x128xf32>
    %77 = arith.addf %75, %76 : vector<8x128xf32>
    %78 = arith.addf %41, %60 : vector<8x128xf32>
    %cst_39 = arith.constant 2.000000e+00 : f32
    %79 = vector.broadcast %cst_39 : f32 to vector<8x128xf32>
    %80 = arith.mulf %79, %78 : vector<8x128xf32>
    %81 = arith.addf %22, %80 : vector<8x128xf32>
    %82 = arith.addf %81, %77 : vector<8x128xf32>
    %cst_40 = arith.constant 0.0166666675 : f32
    %83 = vector.broadcast %cst_40 : f32 to vector<8x128xf32>
    %84 = arith.mulf %83, %82 : vector<8x128xf32>
    %85 = arith.addf %6, %84 : vector<8x128xf32>
    %c0_41 = arith.constant 0 : index
    %c0_42 = arith.constant 0 : index
    %c0_43 = arith.constant 0 : index
    %86 = vector.load %arg8[%c0_41, %c0_42, %c0_43] : memref<1x8x128xf32, #tpu.memory_space<vmem>>, vector<1x8x128xf32>
    %87 = vector.shape_cast %86 : vector<1x8x128xf32> to vector<8x128xf32>
    %88 = vector.shape_cast %85 : vector<8x128xf32> to vector<1x8x128xf32>
    tpu.vector_store %arg8[%c0_41, %c0_42, %c0_43], %88 {strides = array<i32>} : memref<1x8x128xf32, #tpu.memory_space<vmem>>, vector<1x8x128xf32>,
    return
  }
  func.func @transform_0(%arg0: i32) -> (i32, i32, i32) {
    %c0_i32 = arith.constant 0 : i32
    %c0_i32_0 = arith.constant 0 : i32
    %c0_i32_1 = arith.constant 0 : i32
    return %arg0, %c0_i32, %c0_i32_0 : i32, i32, i32
  }
  func.func @transform_1(%arg0: i32) -> (i32, i32, i32) {
    %c0_i32 = arith.constant 0 : i32
    %c0_i32_0 = arith.constant 0 : i32
    %c0_i32_1 = arith.constant 0 : i32
    return %arg0, %c0_i32, %c0_i32_0 : i32, i32, i32
  }
  func.func @transform_2(%arg0: i32) -> (i32, i32) {
    %c0_i32 = arith.constant 0 : i32
    %c0_i32_0 = arith.constant 0 : i32
    %c0_i32_1 = arith.constant 0 : i32
    return %c0_i32, %c0_i32_0 : i32, i32
  }
  func.func @transform_3(%arg0: i32) -> (i32, i32) {
    %c0_i32 = arith.constant 0 : i32
    %c0_i32_0 = arith.constant 0 : i32
    %c0_i32_1 = arith.constant 0 : i32
    return %c0_i32, %c0_i32_0 : i32, i32
  }
  func.func @transform_4(%arg0: i32) -> (i32, i32) {
    %c0_i32 = arith.constant 0 : i32
    %c0_i32_0 = arith.constant 0 : i32
    %c0_i32_1 = arith.constant 0 : i32
    return %c0_i32, %c0_i32_0 : i32, i32
  }
  func.func @transform_5(%arg0: i32) -> (i32, i32) {
    %c0_i32 = arith.constant 0 : i32
    %c0_i32_0 = arith.constant 0 : i32
    %c0_i32_1 = arith.constant 0 : i32
    return %c0_i32, %c0_i32_0 : i32, i32
  }
  func.func @transform_6(%arg0: i32) -> (i32, i32) {
    %c0_i32 = arith.constant 0 : i32
    %c0_i32_0 = arith.constant 0 : i32
    %c0_i32_1 = arith.constant 0 : i32
    return %c0_i32, %c0_i32_0 : i32, i32
  }
  func.func @transform_7(%arg0: i32) -> (i32, i32, i32) {
    %c0_i32 = arith.constant 0 : i32
    %c0_i32_0 = arith.constant 0 : i32
    %c0_i32_1 = arith.constant 0 : i32
    return %arg0, %c0_i32, %c0_i32_0 : i32, i32, i32
  }
}

</mosaic_0001>

<llo_original>
// kernel: tpu_custom_call.1
$region0: #{tpu_custom_call.1}
  #allocation0 [shape = 'u32[]', space=smem, size = 0x4, offset = 0x4, fixed_abs, tag = 'smem constant byte address 0x4 - core index']
  #allocation1 [shape = 'u32[72,128]{1,0:T(1,128)}', space=vmem, size = 0x9000, scoped, tag = 'internal scratch']
  %s0 = inlined_call_operand.vmem [shape: f32[1,8,128], index: 0, kind: input, shape index: {}]
  %s1 = inlined_call_operand.vmem [shape: f32[1,8,128], index: 1, kind: input, shape index: {}]
  %s2 = inlined_call_operand.vmem [shape: f32[128,32], index: 2, kind: input, shape index: {}]
  %s3 = inlined_call_operand.vmem [shape: f32[256,128], index: 3, kind: input, shape index: {}]
  %s4 = inlined_call_operand.vmem [shape: f32[256,1], index: 4, kind: input, shape index: {}]
  %s5 = inlined_call_operand.vmem [shape: f32[8,256], index: 5, kind: input, shape index: {}]
  %s6 = inlined_call_operand.vmem [shape: f32[8,1], index: 6, kind: input, shape index: {}]
  %s7 = inlined_call_operand.hbm [shape: f32[1,8,128], index: 7, kind: output, shape index: {}]
  %s8 = sld [smem:[#allocation0]]
  $region38: #{tpu_custom_call.1} parent=0
    _
  %s10 = ssub.s32 1, %s8
  %s11 = scalar_select 0, %s10, %s8
  $region1: #{tpu_custom_call.1} parent=0
    #allocation2 [shape = 'u8[4096]{0}', space=vmem, size = 0x1000, scoped, tag = 'output window, operand 0, single buffered']
    #allocation3 [shape = 's32[1]{0}', space=sflag, size = 0x4, scoped, tag = 'scoped memory for tpu_custom_call.1']
    %12 = vsyncpa [#allocation3], 0
    // Predicated region
    $region2: #{tpu_custom_call.1} parent=1 // pred_check
      _
    $region3: #{tpu_custom_call.1} parent=1 // pred_check_branch
      %14 = sbr.rel (0) target = $region5
    $region4: #{tpu_custom_call.1} parent=1 // pred_region
      _
    $region5: #{tpu_custom_call.1} parent=1 // pred_fallthru
      _
    // Predicated region
    $region6: #{tpu_custom_call.1} parent=1 // pred_check
      _
    $region7: #{tpu_custom_call.1} parent=1 // pred_check_branch
      %16 = sbr.rel (0) target = $region9
    $region8: #{tpu_custom_call.1} parent=1 // pred_region
      _
    $region9: #{tpu_custom_call.1} parent=1 // pred_fallthru
      _
    // Predicated region
    $region10: #{tpu_custom_call.1} parent=1 // pred_check
      _
    $region11: #{tpu_custom_call.1} parent=1 // pred_check_branch
      %18 = sbr.rel (0) target = $region13
    $region12: #{tpu_custom_call.1} parent=1 // pred_region
      _
    $region13: #{tpu_custom_call.1} parent=1 // pred_fallthru
      _
    // Predicated region
    $region14: #{tpu_custom_call.1} parent=1 // pred_check
      _
    $region15: #{tpu_custom_call.1} parent=1 // pred_check_branch
      %20 = sbr.rel (0) target = $region17
    $region16: #{tpu_custom_call.1} parent=1 // pred_region
      _
    $region17: #{tpu_custom_call.1} parent=1 // pred_fallthru
      _
    // Predicated region
    $region18: #{tpu_custom_call.1} parent=1 // pred_check
      _
    $region19: #{tpu_custom_call.1} parent=1 // pred_check_branch
      %22 = sbr.rel (0) target = $region21
    $region20: #{tpu_custom_call.1} parent=1 // pred_region
      _
    $region21: #{tpu_custom_call.1} parent=1 // pred_fallthru
      _
    // Predicated region
    $region22: #{tpu_custom_call.1} parent=1 // pred_check
      _
    $region23: #{tpu_custom_call.1} parent=1 // pred_check_branch
      %24 = sbr.rel (0) target = $region25
    $region24: #{tpu_custom_call.1} parent=1 // pred_region
      _
    $region25: #{tpu_custom_call.1} parent=1 // pred_fallthru
      _
    // Predicated region
    $region26: #{tpu_custom_call.1} parent=1 // pred_check
      _
    $region27: #{tpu_custom_call.1} parent=1 // pred_check_branch
      %26 = sbr.rel (0) target = $region29
    $region28: #{tpu_custom_call.1} parent=1 // pred_region
      _
    $region29: #{tpu_custom_call.1} parent=1 // pred_fallthru
      _
    %v27 = vld [vmem:[%s2] sm:$0xff]
    %v28 = vld [vmem:[%s2 + $0x8] sm:$0xff]
    %v29 = vld [vmem:[%s2 + $0x10] sm:$0xff]
    %v30 = vld [vmem:[%s2 + $0x18] sm:$0xff]
    %v31 = vld [vmem:[%s2 + $0x20] sm:$0xff]
    %v32 = vld [vmem:[%s2 + $0x28] sm:$0xff]
    %v33 = vld [vmem:[%s2 + $0x30] sm:$0xff]
    %v34 = vld [vmem:[%s2 + $0x38] sm:$0xff]
    %v35 = vld [vmem:[%s2 + $0x40] sm:$0xff]
    %v36 = vld [vmem:[%s2 + $0x48] sm:$0xff]
    %v37 = vld [vmem:[%s2 + $0x50] sm:$0xff]
    %v38 = vld [vmem:[%s2 + $0x58] sm:$0xff]
    %v39 = vld [vmem:[%s2 + $0x60] sm:$0xff]
    %v40 = vld [vmem:[%s2 + $0x68] sm:$0xff]
    %v41 = vld [vmem:[%s2 + $0x70] sm:$0xff]
    %v42 = vld [vmem:[%s2 + $0x78] sm:$0xff]
    %v43 = vld [vmem:[%s3] sm:$0xff]
    %v44 = vld [vmem:[%s3 + $0x8] sm:$0xff]
    %v45 = vld [vmem:[%s3 + $0x10] sm:$0xff]
    %v46 = vld [vmem:[%s3 + $0x18] sm:$0xff]
    %v47 = vld [vmem:[%s3 + $0x20] sm:$0xff]
    %v48 = vld [vmem:[%s3 + $0x28] sm:$0xff]
    %v49 = vld [vmem:[%s3 + $0x30] sm:$0xff]
    %v50 = vld [vmem:[%s3 + $0x38] sm:$0xff]
    %v51 = vld [vmem:[%s3 + $0x40] sm:$0xff]
    %v52 = vld [vmem:[%s3 + $0x48] sm:$0xff]
    %v53 = vld [vmem:[%s3 + $0x50] sm:$0xff]
    %v54 = vld [vmem:[%s3 + $0x58] sm:$0xff]
    %v55 = vld [vmem:[%s3 + $0x60] sm:$0xff]
    %v56 = vld [vmem:[%s3 + $0x68] sm:$0xff]
    %v57 = vld [vmem:[%s3 + $0x70] sm:$0xff]
    %v58 = vld [vmem:[%s3 + $0x78] sm:$0xff]
    %v59 = vld [vmem:[%s3 + $0x80] sm:$0xff]
    %v60 = vld [vmem:[%s3 + $0x88] sm:$0xff]
    %v61 = vld [vmem:[%s3 + $0x90] sm:$0xff]
    %v62 = vld [vmem:[%s3 + $0x98] sm:$0xff]
    %v63 = vld [vmem:[%s3 + $0xa0] sm:$0xff]
    %v64 = vld [vmem:[%s3 + $0xa8] sm:$0xff]
    %v65 = vld [vmem:[%s3 + $0xb0] sm:$0xff]
    %v66 = vld [vmem:[%s3 + $0xb8] sm:$0xff]
    %v67 = vld [vmem:[%s3 + $0xc0] sm:$0xff]
    %v68 = vld [vmem:[%s3 + $0xc8] sm:$0xff]
    %v69 = vld [vmem:[%s3 + $0xd0] sm:$0xff]
    %v70 = vld [vmem:[%s3 + $0xd8] sm:$0xff]
    %v71 = vld [vmem:[%s3 + $0xe0] sm:$0xff]
    %v72 = vld [vmem:[%s3 + $0xe8] sm:$0xff]
    %v73 = vld [vmem:[%s3 + $0xf0] sm:$0xff]
    %v74 = vld [vmem:[%s3 + $0xf8] sm:$0xff]
    %v75 = vld [vmem:[%s4] sm:$0xff]
    %v76 = vld [vmem:[%s4 + $0x8] sm:$0xff]
    %v77 = vld [vmem:[%s4 + $0x10] sm:$0xff]
    %v78 = vld [vmem:[%s4 + $0x18] sm:$0xff]
    %v79 = vld [vmem:[%s4 + $0x20] sm:$0xff]
    %v80 = vld [vmem:[%s4 + $0x28] sm:$0xff]
    %v81 = vld [vmem:[%s4 + $0x30] sm:$0xff]
    %v82 = vld [vmem:[%s4 + $0x38] sm:$0xff]
    %v83 = vld [vmem:[%s4 + $0x40] sm:$0xff]
    %v84 = vld [vmem:[%s4 + $0x48] sm:$0xff]
    %v85 = vld [vmem:[%s4 + $0x50] sm:$0xff]
    %v86 = vld [vmem:[%s4 + $0x58] sm:$0xff]
    %v87 = vld [vmem:[%s4 + $0x60] sm:$0xff]
    %v88 = vld [vmem:[%s4 + $0x68] sm:$0xff]
    %v89 = vld [vmem:[%s4 + $0x70] sm:$0xff]
    %v90 = vld [vmem:[%s4 + $0x78] sm:$0xff]
    %v91 = vld [vmem:[%s4 + $0x80] sm:$0xff]
    %v92 = vld [vmem:[%s4 + $0x88] sm:$0xff]
    %v93 = vld [vmem:[%s4 + $0x90] sm:$0xff]
    %v94 = vld [vmem:[%s4 + $0x98] sm:$0xff]
    %v95 = vld [vmem:[%s4 + $0xa0] sm:$0xff]
    %v96 = vld [vmem:[%s4 + $0xa8] sm:$0xff]
    %v97 = vld [vmem:[%s4 + $0xb0] sm:$0xff]
    %v98 = vld [vmem:[%s4 + $0xb8] sm:$0xff]
    %v99 = vld [vmem:[%s4 + $0xc0] sm:$0xff]
    %v100 = vld [vmem:[%s4 + $0xc8] sm:$0xff]
    %v101 = vld [vmem:[%s4 + $0xd0] sm:$0xff]
    %v102 = vld [vmem:[%s4 + $0xd8] sm:$0xff]
    %v103 = vld [vmem:[%s4 + $0xe0] sm:$0xff]
    %v104 = vld [vmem:[%s4 + $0xe8] sm:$0xff]
    %v105 = vld [vmem:[%s4 + $0xf0] sm:$0xff]
    %v106 = vld [vmem:[%s4 + $0xf8] sm:$0xff]
    %v107 = vld [vmem:[%s5] sm:$0xff]
    %v108 = vld [vmem:[%s5 + $0x8] sm:$0xff]
    %v109 = vld [vmem:[%s6] sm:$0xff]
    %v110 = vld [vmem:[%s0] sm:$0xff]
    %v111 = vld [vmem:[%s1] sm:$0xff]
    %v112 = vmul.f32 %v110, %v110
    %v113 = vmul.f32 %v112, %v110
    %vm114 = vcmask 261120
    %v116 = vsel %vm114, %v27, 0
    %v119 = vsel %vm114, %v28, 0
    %v122 = vsel %vm114, %v29, 0
    %v125 = vsel %vm114, %v30, 0
    %v128 = vsel %vm114, %v31, 0
    %v131 = vsel %vm114, %v32, 0
    %v134 = vsel %vm114, %v33, 0
    %v137 = vsel %vm114, %v34, 0
    %v140 = vsel %vm114, %v35, 0
    %v143 = vsel %vm114, %v36, 0
    %v146 = vsel %vm114, %v37, 0
    %v149 = vsel %vm114, %v38, 0
    %v152 = vsel %vm114, %v39, 0
    %v155 = vsel %vm114, %v40, 0
    %v158 = vsel %vm114, %v41, 0
    %v161 = vsel %vm114, %v42, 0
    %163 = vmatpush.msra.mxu0 0.0
    %164 = vmatpush.msra.mxu0 0.0
    %165 = vmatpush.msra.mxu0 0.0
    %166 = vmatpush.msra.mxu0 0.0
    %167 = vmatpush.msra.mxu0 0.0
    %168 = vmatpush.msra.mxu0 0.0
    %169 = vmatpush.msra.mxu0 0.0
    %170 = vmatpush.msra.mxu0 0.0
    %171 = vmatpush.msra.mxu0 0.0
    %172 = vmatpush.msra.mxu0 0.0
    %173 = vmatpush.msra.mxu0 0.0
    %174 = vmatpush.msra.mxu0 0.0
    %175 = vmatpush.msra.mxu0 %v111
    %176 = vmatpush.msra.mxu0 %v113
    %177 = vmatpush.msra.mxu0 %v112
    %178 = vmatpush.msra.mxu0 %v110
    %179 = vmatmul.f32.gmra.mxu0 %v116
    %v180 = vpop.f32.mrf.mxu0
    %v181 = vadd.f32 0.0, %v180
    %182 = vmatmul.f32.gmra.mxu0 %v119
    %v183 = vpop.f32.mrf.mxu0
    %v184 = vadd.f32 0.0, %v183
    %185 = vmatmul.f32.gmra.mxu0 %v122
    %v186 = vpop.f32.mrf.mxu0
    %v187 = vadd.f32 0.0, %v186
    %188 = vmatmul.f32.gmra.mxu0 %v125
    %v189 = vpop.f32.mrf.mxu0
    %v190 = vadd.f32 0.0, %v189
    %191 = vmatmul.f32.gmra.mxu0 %v128
    %v192 = vpop.f32.mrf.mxu0
    %v193 = vadd.f32 0.0, %v192
    %194 = vmatmul.f32.gmra.mxu0 %v131
    %v195 = vpop.f32.mrf.mxu0
    %v196 = vadd.f32 0.0, %v195
    %197 = vmatmul.f32.gmra.mxu0 %v134
    %v198 = vpop.f32.mrf.mxu0
    %v199 = vadd.f32 0.0, %v198
    %200 = vmatmul.f32.gmra.mxu0 %v137
    %v201 = vpop.f32.mrf.mxu0
    %v202 = vadd.f32 0.0, %v201
    %203 = vmatmul.f32.gmra.mxu0 %v140
    %v204 = vpop.f32.mrf.mxu0
    %v205 = vadd.f32 0.0, %v204
    %206 = vmatmul.f32.gmra.mxu0 %v143
    %v207 = vpop.f32.mrf.mxu0
    %v208 = vadd.f32 0.0, %v207
    %209 = vmatmul.f32.gmra.mxu0 %v146
    %v210 = vpop.f32.mrf.mxu0
    %v211 = vadd.f32 0.0, %v210
    %212 = vmatmul.f32.gmra.mxu0 %v149
    %v213 = vpop.f32.mrf.mxu0
    %v214 = vadd.f32 0.0, %v213
    %215 = vmatmul.f32.gmra.mxu0 %v152
    %v216 = vpop.f32.mrf.mxu0
    %v217 = vadd.f32 0.0, %v216
    %218 = vmatmul.f32.gmra.mxu0 %v155
    %v219 = vpop.f32.mrf.mxu0
    %v220 = vadd.f32 0.0, %v219
    %221 = vmatmul.f32.gmra.mxu0 %v158
    %v222 = vpop.f32.mrf.mxu0
    %v223 = vadd.f32 0.0, %v222
    %224 = vmatmul.f32.gmra.mxu0 %v161
    %v225 = vpop.f32.mrf.mxu0
    %v226 = vadd.f32 0.0, %v225
    %227 = vdwg.mxu0
    %v228 = vmax.f32 %v181, 0.0
    %v229 = vmax.f32 %v184, 0.0
    %v230 = vmax.f32 %v187, 0.0
    %v231 = vmax.f32 %v190, 0.0
    %v232 = vmax.f32 %v193, 0.0
    %v233 = vmax.f32 %v196, 0.0
    %v234 = vmax.f32 %v199, 0.0
    %v235 = vmax.f32 %v202, 0.0
    %v236 = vmax.f32 %v205, 0.0
    %v237 = vmax.f32 %v208, 0.0
    %v238 = vmax.f32 %v211, 0.0
    %v239 = vmax.f32 %v214, 0.0
    %v240 = vmax.f32 %v217, 0.0
    %v241 = vmax.f32 %v220, 0.0
    %v242 = vmax.f32 %v223, 0.0
    %v243 = vmax.f32 %v226, 0.0
    %245 = vset.pattern.permute.xlu0 0
    %246 = vperm.xlu0 %245, %v75
    %v247 = vpop.permute.xlu0 %246
    %250 = vset.pattern.permute.xlu0 0
    %251 = vperm.xlu0 %250, %v76
    %v252 = vpop.permute.xlu0 %251
    %255 = vset.pattern.permute.xlu0 0
    %256 = vperm.xlu0 %255, %v77
    %v257 = vpop.permute.xlu0 %256
    %260 = vset.pattern.permute.xlu0 0
    %261 = vperm.xlu0 %260, %v78
    %v262 = vpop.permute.xlu0 %261
    %265 = vset.pattern.permute.xlu0 0
    %266 = vperm.xlu0 %265, %v79
    %v267 = vpop.permute.xlu0 %266
    %270 = vset.pattern.permute.xlu0 0
    %271 = vperm.xlu0 %270, %v80
    %v272 = vpop.permute.xlu0 %271
    %275 = vset.pattern.permute.xlu0 0
    %276 = vperm.xlu0 %275, %v81
    %v277 = vpop.permute.xlu0 %276
    %280 = vset.pattern.permute.xlu0 0
    %281 = vperm.xlu0 %280, %v82
    %v282 = vpop.permute.xlu0 %281
    %285 = vset.pattern.permute.xlu0 0
    %286 = vperm.xlu0 %285, %v83
    %v287 = vpop.permute.xlu0 %286
    %290 = vset.pattern.permute.xlu0 0
    %291 = vperm.xlu0 %290, %v84
    %v292 = vpop.permute.xlu0 %291
    %295 = vset.pattern.permute.xlu0 0
    %296 = vperm.xlu0 %295, %v85
    %v297 = vpop.permute.xlu0 %296
    %300 = vset.pattern.permute.xlu0 0
    %301 = vperm.xlu0 %300, %v86
    %v302 = vpop.permute.xlu0 %301
    %305 = vset.pattern.permute.xlu0 0
    %306 = vperm.xlu0 %305, %v87
    %v307 = vpop.permute.xlu0 %306
    %310 = vset.pattern.permute.xlu0 0
    %311 = vperm.xlu0 %310, %v88
    %v312 = vpop.permute.xlu0 %311
    %315 = vset.pattern.permute.xlu0 0
    %316 = vperm.xlu0 %315, %v89
    %v317 = vpop.permute.xlu0 %316
    %320 = vset.pattern.permute.xlu0 0
    %321 = vperm.xlu0 %320, %v90
    %v322 = vpop.permute.xlu0 %321
    %325 = vset.pattern.permute.xlu0 0
    %326 = vperm.xlu0 %325, %v91
    %v327 = vpop.permute.xlu0 %326
    %330 = vset.pattern.permute.xlu0 0
    %331 = vperm.xlu0 %330, %v92
    %v332 = vpop.permute.xlu0 %331
    %335 = vset.pattern.permute.xlu0 0
    %336 = vperm.xlu0 %335, %v93
    %v337 = vpop.permute.xlu0 %336
    %340 = vset.pattern.permute.xlu0 0
    %341 = vperm.xlu0 %340, %v94
    %v342 = vpop.permute.xlu0 %341
    %345 = vset.pattern.permute.xlu0 0
    %346 = vperm.xlu0 %345, %v95
    %v347 = vpop.permute.xlu0 %346
    %350 = vset.pattern.permute.xlu0 0
    %351 = vperm.xlu0 %350, %v96
    %v352 = vpop.permute.xlu0 %351
    %355 = vset.pattern.permute.xlu0 0
    %356 = vperm.xlu0 %355, %v97
    %v357 = vpop.permute.xlu0 %356
    %360 = vset.pattern.permute.xlu0 0
    %361 = vperm.xlu0 %360, %v98
    %v362 = vpop.permute.xlu0 %361
    %365 = vset.pattern.permute.xlu0 0
    %366 = vperm.xlu0 %365, %v99
    %v367 = vpop.permute.xlu0 %366
    %370 = vset.pattern.permute.xlu0 0
    %371 = vperm.xlu0 %370, %v100
    %v372 = vpop.permute.xlu0 %371
    %375 = vset.pattern.permute.xlu0 0
    %376 = vperm.xlu0 %375, %v101
    %v377 = vpop.permute.xlu0 %376
    %380 = vset.pattern.permute.xlu0 0
    %381 = vperm.xlu0 %380, %v102
    %v382 = vpop.permute.xlu0 %381
    %385 = vset.pattern.permute.xlu0 0
    %386 = vperm.xlu0 %385, %v103
    %v387 = vpop.permute.xlu0 %386
    %390 = vset.pattern.permute.xlu0 0
    %391 = vperm.xlu0 %390, %v104
    %v392 = vpop.permute.xlu0 %391
    %395 = vset.pattern.permute.xlu0 0
    %396 = vperm.xlu0 %395, %v105
    %v397 = vpop.permute.xlu0 %396
    %400 = vset.pattern.permute.xlu0 0
    %401 = vperm.xlu0 %400, %v106
    %v402 = vpop.permute.xlu0 %401
    %404 = vmatpush.msra.mxu0 %v243
    %405 = vmatpush.msra.mxu0 %v242
    %406 = vmatpush.msra.mxu0 %v241
    %407 = vmatpush.msra.mxu0 %v240
    %408 = vmatpush.msra.mxu0 %v239
    %409 = vmatpush.msra.mxu0 %v238
    %410 = vmatpush.msra.mxu0 %v237
    %411 = vmatpush.msra.mxu0 %v236
    %412 = vmatpush.msra.mxu0 %v235
    %413 = vmatpush.msra.mxu0 %v234
    %414 = vmatpush.msra.mxu0 %v233
    %415 = vmatpush.msra.mxu0 %v232
    %416 = vmatpush.msra.mxu0 %v231
    %417 = vmatpush.msra.mxu0 %v230
    %418 = vmatpush.msra.mxu0 %v229
    %419 = vmatpush.msra.mxu0 %v228
    %420 = vmatmul.f32.gmra.mxu0 %v43
    %v421 = vpop.f32.mrf.mxu0
    %v422 = vadd.f32 %v247, %v421
    %423 = vmatmul.f32.gmra.mxu0 %v44
    %v424 = vpop.f32.mrf.mxu0
    %v425 = vadd.f32 %v252, %v424
    %426 = vmatmul.f32.gmra.mxu0 %v45
    %v427 = vpop.f32.mrf.mxu0
    %v428 = vadd.f32 %v257, %v427
    %429 = vmatmul.f32.gmra.mxu0 %v46
    %v430 = vpop.f32.mrf.mxu0
    %v431 = vadd.f32 %v262, %v430
    %432 = vmatmul.f32.gmra.mxu0 %v47
    %v433 = vpop.f32.mrf.mxu0
    %v434 = vadd.f32 %v267, %v433
    %435 = vmatmul.f32.gmra.mxu0 %v48
    %v436 = vpop.f32.mrf.mxu0
    %v437 = vadd.f32 %v272, %v436
    %438 = vmatmul.f32.gmra.mxu0 %v49
    %v439 = vpop.f32.mrf.mxu0
    %v440 = vadd.f32 %v277, %v439
    %441 = vmatmul.f32.gmra.mxu0 %v50
    %v442 = vpop.f32.mrf.mxu0
    %v443 = vadd.f32 %v282, %v442
    %444 = vmatmul.f32.gmra.mxu0 %v51
    %v445 = vpop.f32.mrf.mxu0
    %v446 = vadd.f32 %v287, %v445
    %447 = vmatmul.f32.gmra.mxu0 %v52
    %v448 = vpop.f32.mrf.mxu0
    %v449 = vadd.f32 %v292, %v448
    %450 = vmatmul.f32.gmra.mxu0 %v53
    %v451 = vpop.f32.mrf.mxu0
    %v452 = vadd.f32 %v297, %v451
    %453 = vmatmul.f32.gmra.mxu0 %v54
    %v454 = vpop.f32.mrf.mxu0
    %v455 = vadd.f32 %v302, %v454
    %456 = vmatmul.f32.gmra.mxu0 %v55
    %v457 = vpop.f32.mrf.mxu0
    %v458 = vadd.f32 %v307, %v457
    %459 = vmatmul.f32.gmra.mxu0 %v56
    %v460 = vpop.f32.mrf.mxu0
    %v461 = vadd.f32 %v312, %v460
    %462 = vmatmul.f32.gmra.mxu0 %v57
    %v463 = vpop.f32.mrf.mxu0
    %v464 = vadd.f32 %v317, %v463
    %465 = vmatmul.f32.gmra.mxu0 %v58
    %v466 = vpop.f32.mrf.mxu0
    %v467 = vadd.f32 %v322, %v466
    %468 = vmatmul.f32.gmra.mxu0 %v59
    %v469 = vpop.f32.mrf.mxu0
    %v470 = vadd.f32 %v327, %v469
    %471 = vmatmul.f32.gmra.mxu0 %v60
    %v472 = vpop.f32.mrf.mxu0
    %v473 = vadd.f32 %v332, %v472
    %474 = vmatmul.f32.gmra.mxu0 %v61
    %v475 = vpop.f32.mrf.mxu0
    %v476 = vadd.f32 %v337, %v475
    %477 = vmatmul.f32.gmra.mxu0 %v62
    %v478 = vpop.f32.mrf.mxu0
    %v479 = vadd.f32 %v342, %v478
    %480 = vmatmul.f32.gmra.mxu0 %v63
    %v481 = vpop.f32.mrf.mxu0
    %v482 = vadd.f32 %v347, %v481
    %483 = vmatmul.f32.gmra.mxu0 %v64
    %v484 = vpop.f32.mrf.mxu0
    %v485 = vadd.f32 %v352, %v484
    %486 = vmatmul.f32.gmra.mxu0 %v65
    %v487 = vpop.f32.mrf.mxu0
    %v488 = vadd.f32 %v357, %v487
    %489 = vmatmul.f32.gmra.mxu0 %v66
    %v490 = vpop.f32.mrf.mxu0
    %v491 = vadd.f32 %v362, %v490
    %492 = vmatmul.f32.gmra.mxu0 %v67
    %v493 = vpop.f32.mrf.mxu0
    %v494 = vadd.f32 %v367, %v493
    %495 = vmatmul.f32.gmra.mxu0 %v68
    %v496 = vpop.f32.mrf.mxu0
    %v497 = vadd.f32 %v372, %v496
    %498 = vmatmul.f32.gmra.mxu0 %v69
    %v499 = vpop.f32.mrf.mxu0
    %v500 = vadd.f32 %v377, %v499
    %501 = vmatmul.f32.gmra.mxu0 %v70
    %v502 = vpop.f32.mrf.mxu0
    %v503 = vadd.f32 %v382, %v502
    %504 = vmatmul.f32.gmra.mxu0 %v71
    %v505 = vpop.f32.mrf.mxu0
    %v506 = vadd.f32 %v387, %v505
    %507 = vmatmul.f32.gmra.mxu0 %v72
    %v508 = vpop.f32.mrf.mxu0
    %v509 = vadd.f32 %v392, %v508
    %510 = vmatmul.f32.gmra.mxu0 %v73
    %v511 = vpop.f32.mrf.mxu0
    %v512 = vadd.f32 %v397, %v511
    %513 = vmatmul.f32.gmra.mxu0 %v74
    %v514 = vpop.f32.mrf.mxu0
    %v515 = vadd.f32 %v402, %v514
    %516 = vdwg.mxu0
    %v517 = vmax.f32 %v422, 0.0
    %v518 = vmax.f32 %v425, 0.0
    %v519 = vmax.f32 %v428, 0.0
    %v520 = vmax.f32 %v431, 0.0
    %v521 = vmax.f32 %v434, 0.0
    %v522 = vmax.f32 %v437, 0.0
    %v523 = vmax.f32 %v440, 0.0
    %v524 = vmax.f32 %v443, 0.0
    %v525 = vmax.f32 %v446, 0.0
    %v526 = vmax.f32 %v449, 0.0
    %v527 = vmax.f32 %v452, 0.0
    %v528 = vmax.f32 %v455, 0.0
    %v529 = vmax.f32 %v458, 0.0
    %v530 = vmax.f32 %v461, 0.0
    %v531 = vmax.f32 %v464, 0.0
    %v532 = vmax.f32 %v467, 0.0
    %v533 = vmax.f32 %v470, 0.0
    %v534 = vmax.f32 %v473, 0.0
    %v535 = vmax.f32 %v476, 0.0
    %v536 = vmax.f32 %v479, 0.0
    %v537 = vmax.f32 %v482, 0.0
    %v538 = vmax.f32 %v485, 0.0
    %v539 = vmax.f32 %v488, 0.0
    %v540 = vmax.f32 %v491, 0.0
    %v541 = vmax.f32 %v494, 0.0
    %v542 = vmax.f32 %v497, 0.0
    %v543 = vmax.f32 %v500, 0.0
    %v544 = vmax.f32 %v503, 0.0
    %v545 = vmax.f32 %v506, 0.0
    %v546 = vmax.f32 %v509, 0.0
    %v547 = vmax.f32 %v512, 0.0
    %v548 = vmax.f32 %v515, 0.0
    %550 = vset.pattern.permute.xlu0 0
    %551 = vperm.xlu0 %550, %v109
    %v552 = vpop.permute.xlu0 %551
    %554 = vmatpush.msra.mxu0 %v532
    %555 = vmatpush.msra.mxu0 %v531
    %556 = vmatpush.msra.mxu0 %v530
    %557 = vmatpush.msra.mxu0 %v529
    %558 = vmatpush.msra.mxu0 %v528
    %559 = vmatpush.msra.mxu0 %v527
    %560 = vmatpush.msra.mxu0 %v526
    %561 = vmatpush.msra.mxu0 %v525
    %562 = vmatpush.msra.mxu0 %v524
    %563 = vmatpush.msra.mxu0 %v523
    %564 = vmatpush.msra.mxu0 %v522
    %565 = vmatpush.msra.mxu0 %v521
    %566 = vmatpush.msra.mxu0 %v520
    %567 = vmatpush.msra.mxu0 %v519
    %568 = vmatpush.msra.mxu0 %v518
    %569 = vmatpush.msra.mxu0 %v517
    %570 = vmatmul.f32.gmra.mxu0 %v107
    %v571 = vpop.f32.mrf.mxu0
    %v572 = vadd.f32 %v552, %v571
    %573 = vdwg.mxu0
    %574 = vmatpush.msra.mxu0 %v548
    %575 = vmatpush.msra.mxu0 %v547
    %576 = vmatpush.msra.mxu0 %v546
    %577 = vmatpush.msra.mxu0 %v545
    %578 = vmatpush.msra.mxu0 %v544
    %579 = vmatpush.msra.mxu0 %v543
    %580 = vmatpush.msra.mxu0 %v542
    %581 = vmatpush.msra.mxu0 %v541
    %582 = vmatpush.msra.mxu0 %v540
    %583 = vmatpush.msra.mxu0 %v539
    %584 = vmatpush.msra.mxu0 %v538
    %585 = vmatpush.msra.mxu0 %v537
    %586 = vmatpush.msra.mxu0 %v536
    %587 = vmatpush.msra.mxu0 %v535
    %588 = vmatpush.msra.mxu0 %v534
    %589 = vmatpush.msra.mxu0 %v533
    %590 = vmatmul.f32.gmra.mxu0 %v108
    %v591 = vpop.f32.mrf.mxu0
    %v592 = vadd.f32 %v572, %v591
    %593 = vdwg.mxu0
    %v594 = vmul.f32 %v592, 0.05
    %v595 = vadd.f32 %v110, %v594
    %v596 = vmul.f32 %v592, 2.0
    %v597 = vmul.f32 %v595, %v595
    %v598 = vmul.f32 %v597, %v595
    %599 = vmatpush.msra.mxu0 0.0
    %600 = vmatpush.msra.mxu0 0.0
    %601 = vmatpush.msra.mxu0 0.0
    %602 = vmatpush.msra.mxu0 0.0
    %603 = vmatpush.msra.mxu0 0.0
    %604 = vmatpush.msra.mxu0 0.0
    %605 = vmatpush.msra.mxu0 0.0
    %606 = vmatpush.msra.mxu0 0.0
    %607 = vmatpush.msra.mxu0 0.0
    %608 = vmatpush.msra.mxu0 0.0
    %609 = vmatpush.msra.mxu0 0.0
    %610 = vmatpush.msra.mxu0 0.0
    %611 = vmatpush.msra.mxu0 %v596
    %612 = vmatpush.msra.mxu0 %v598
    %613 = vmatpush.msra.mxu0 %v597
    %614 = vmatpush.msra.mxu0 %v595
    %615 = vmatmul.f32.gmra.mxu0 %v116
    %v616 = vpop.f32.mrf.mxu0
    %v617 = vadd.f32 0.0, %v616
    %618 = vmatmul.f32.gmra.mxu0 %v119
    %v619 = vpop.f32.mrf.mxu0
    %v620 = vadd.f32 0.0, %v619
    %621 = vmatmul.f32.gmra.mxu0 %v122
    %v622 = vpop.f32.mrf.mxu0
    %v623 = vadd.f32 0.0, %v622
    %624 = vmatmul.f32.gmra.mxu0 %v125
    %v625 = vpop.f32.mrf.mxu0
    %v626 = vadd.f32 0.0, %v625
    %627 = vmatmul.f32.gmra.mxu0 %v128
    %v628 = vpop.f32.mrf.mxu0
    %v629 = vadd.f32 0.0, %v628
    %630 = vmatmul.f32.gmra.mxu0 %v131
    %v631 = vpop.f32.mrf.mxu0
    %v632 = vadd.f32 0.0, %v631
    %633 = vmatmul.f32.gmra.mxu0 %v134
    %v634 = vpop.f32.mrf.mxu0
    %v635 = vadd.f32 0.0, %v634
    %636 = vmatmul.f32.gmra.mxu0 %v137
    %v637 = vpop.f32.mrf.mxu0
    %v638 = vadd.f32 0.0, %v637
    %639 = vmatmul.f32.gmra.mxu0 %v140
    %v640 = vpop.f32.mrf.mxu0
    %v641 = vadd.f32 0.0, %v640
    %642 = vmatmul.f32.gmra.mxu0 %v143
    %v643 = vpop.f32.mrf.mxu0
    %v644 = vadd.f32 0.0, %v643
    %645 = vmatmul.f32.gmra.mxu0 %v146
    %v646 = vpop.f32.mrf.mxu0
    %v647 = vadd.f32 0.0, %v646
    %648 = vmatmul.f32.gmra.mxu0 %v149
    %v649 = vpop.f32.mrf.mxu0
    %v650 = vadd.f32 0.0, %v649
    %651 = vmatmul.f32.gmra.mxu0 %v152
    %v652 = vpop.f32.mrf.mxu0
    %v653 = vadd.f32 0.0, %v652
    %654 = vmatmul.f32.gmra.mxu0 %v155
    %v655 = vpop.f32.mrf.mxu0
    %v656 = vadd.f32 0.0, %v655
    %657 = vmatmul.f32.gmra.mxu0 %v158
    %v658 = vpop.f32.mrf.mxu0
    %v659 = vadd.f32 0.0, %v658
    %660 = vmatmul.f32.gmra.mxu0 %v161
    %v661 = vpop.f32.mrf.mxu0
    %v662 = vadd.f32 0.0, %v661
    %663 = vdwg.mxu0
    %v664 = vmax.f32 %v617, 0.0
    %v665 = vmax.f32 %v620, 0.0
    %v666 = vmax.f32 %v623, 0.0
    %v667 = vmax.f32 %v626, 0.0
    %v668 = vmax.f32 %v629, 0.0
    %v669 = vmax.f32 %v632, 0.0
    %v670 = vmax.f32 %v635, 0.0
    %v671 = vmax.f32 %v638, 0.0
    %v672 = vmax.f32 %v641, 0.0
    %v673 = vmax.f32 %v644, 0.0
    %v674 = vmax.f32 %v647, 0.0
    %v675 = vmax.f32 %v650, 0.0
    %v676 = vmax.f32 %v653, 0.0
    %v677 = vmax.f32 %v656, 0.0
    %v678 = vmax.f32 %v659, 0.0
    %v679 = vmax.f32 %v662, 0.0
    %680 = vmatpush.msra.mxu0 %v679
    %681 = vmatpush.msra.mxu0 %v678
    %682 = vmatpush.msra.mxu0 %v677
    %683 = vmatpush.msra.mxu0 %v676
    %684 = vmatpush.msra.mxu0 %v675
    %685 = vmatpush.msra.mxu0 %v674
    %686 = vmatpush.msra.mxu0 %v673
    %687 = vmatpush.msra.mxu0 %v672
    %688 = vmatpush.msra.mxu0 %v671
    %689 = vmatpush.msra.mxu0 %v670
    %690 = vmatpush.msra.mxu0 %v669
    %691 = vmatpush.msra.mxu0 %v668
    %692 = vmatpush.msra.mxu0 %v667
    %693 = vmatpush.msra.mxu0 %v666
    %694 = vmatpush.msra.mxu0 %v665
    %695 = vmatpush.msra.mxu0 %v664
    %696 = vmatmul.f32.gmra.mxu0 %v43
    %v697 = vpop.f32.mrf.mxu0
    %v698 = vadd.f32 %v247, %v697
    %699 = vmatmul.f32.gmra.mxu0 %v44
    %v700 = vpop.f32.mrf.mxu0
    %v701 = vadd.f32 %v252, %v700
    %702 = vmatmul.f32.gmra.mxu0 %v45
    %v703 = vpop.f32.mrf.mxu0
    %v704 = vadd.f32 %v257, %v703
    %705 = vmatmul.f32.gmra.mxu0 %v46
    %v706 = vpop.f32.mrf.mxu0
    %v707 = vadd.f32 %v262, %v706
    %708 = vmatmul.f32.gmra.mxu0 %v47
    %v709 = vpop.f32.mrf.mxu0
    %v710 = vadd.f32 %v267, %v709
    %711 = vmatmul.f32.gmra.mxu0 %v48
    %v712 = vpop.f32.mrf.mxu0
    %v713 = vadd.f32 %v272, %v712
    %714 = vmatmul.f32.gmra.mxu0 %v49
    %v715 = vpop.f32.mrf.mxu0
    %v716 = vadd.f32 %v277, %v715
    %717 = vmatmul.f32.gmra.mxu0 %v50
    %v718 = vpop.f32.mrf.mxu0
    %v719 = vadd.f32 %v282, %v718
    %720 = vmatmul.f32.gmra.mxu0 %v51
    %v721 = vpop.f32.mrf.mxu0
    %v722 = vadd.f32 %v287, %v721
    %723 = vmatmul.f32.gmra.mxu0 %v52
    %v724 = vpop.f32.mrf.mxu0
    %v725 = vadd.f32 %v292, %v724
    %726 = vmatmul.f32.gmra.mxu0 %v53
    %v727 = vpop.f32.mrf.mxu0
    %v728 = vadd.f32 %v297, %v727
    %729 = vmatmul.f32.gmra.mxu0 %v54
    %v730 = vpop.f32.mrf.mxu0
    %v731 = vadd.f32 %v302, %v730
    %732 = vmatmul.f32.gmra.mxu0 %v55
    %v733 = vpop.f32.mrf.mxu0
    %v734 = vadd.f32 %v307, %v733
    %735 = vmatmul.f32.gmra.mxu0 %v56
    %v736 = vpop.f32.mrf.mxu0
    %v737 = vadd.f32 %v312, %v736
    %738 = vmatmul.f32.gmra.mxu0 %v57
    %v739 = vpop.f32.mrf.mxu0
    %v740 = vadd.f32 %v317, %v739
    %741 = vmatmul.f32.gmra.mxu0 %v58
    %v742 = vpop.f32.mrf.mxu0
    %v743 = vadd.f32 %v322, %v742
    %744 = vmatmul.f32.gmra.mxu0 %v59
    %v745 = vpop.f32.mrf.mxu0
    %v746 = vadd.f32 %v327, %v745
    %747 = vmatmul.f32.gmra.mxu0 %v60
    %v748 = vpop.f32.mrf.mxu0
    %v749 = vadd.f32 %v332, %v748
    %750 = vmatmul.f32.gmra.mxu0 %v61
    %v751 = vpop.f32.mrf.mxu0
    %v752 = vadd.f32 %v337, %v751
    %753 = vmatmul.f32.gmra.mxu0 %v62
    %v754 = vpop.f32.mrf.mxu0
    %v755 = vadd.f32 %v342, %v754
    %756 = vmatmul.f32.gmra.mxu0 %v63
    %v757 = vpop.f32.mrf.mxu0
    %v758 = vadd.f32 %v347, %v757
    %759 = vmatmul.f32.gmra.mxu0 %v64
    %v760 = vpop.f32.mrf.mxu0
    %v761 = vadd.f32 %v352, %v760
    %762 = vmatmul.f32.gmra.mxu0 %v65
    %v763 = vpop.f32.mrf.mxu0
    %v764 = vadd.f32 %v357, %v763
    %765 = vmatmul.f32.gmra.mxu0 %v66
    %v766 = vpop.f32.mrf.mxu0
    %v767 = vadd.f32 %v362, %v766
    %768 = vmatmul.f32.gmra.mxu0 %v67
    %v769 = vpop.f32.mrf.mxu0
    %v770 = vadd.f32 %v367, %v769
    %771 = vmatmul.f32.gmra.mxu0 %v68
    %v772 = vpop.f32.mrf.mxu0
    %v773 = vadd.f32 %v372, %v772
    %774 = vmatmul.f32.gmra.mxu0 %v69
    %v775 = vpop.f32.mrf.mxu0
    %v776 = vadd.f32 %v377, %v775
    %777 = vmatmul.f32.gmra.mxu0 %v70
    %v778 = vpop.f32.mrf.mxu0
    %v779 = vadd.f32 %v382, %v778
    %780 = vmatmul.f32.gmra.mxu0 %v71
    %v781 = vpop.f32.mrf.mxu0
    %v782 = vadd.f32 %v387, %v781
    %783 = vmatmul.f32.gmra.mxu0 %v72
    %v784 = vpop.f32.mrf.mxu0
    %v785 = vadd.f32 %v392, %v784
    %786 = vmatmul.f32.gmra.mxu0 %v73
    %v787 = vpop.f32.mrf.mxu0
    %v788 = vadd.f32 %v397, %v787
    %789 = vmatmul.f32.gmra.mxu0 %v74
    %v790 = vpop.f32.mrf.mxu0
    %v791 = vadd.f32 %v402, %v790
    %792 = vdwg.mxu0
    %v793 = vmax.f32 %v698, 0.0
    %v794 = vmax.f32 %v701, 0.0
    %v795 = vmax.f32 %v704, 0.0
    %v796 = vmax.f32 %v707, 0.0
    %v797 = vmax.f32 %v710, 0.0
    %v798 = vmax.f32 %v713, 0.0
    %v799 = vmax.f32 %v716, 0.0
    %v800 = vmax.f32 %v719, 0.0
    %v801 = vmax.f32 %v722, 0.0
    %v802 = vmax.f32 %v725, 0.0
    %v803 = vmax.f32 %v728, 0.0
    %v804 = vmax.f32 %v731, 0.0
    %v805 = vmax.f32 %v734, 0.0
    %v806 = vmax.f32 %v737, 0.0
    %v807 = vmax.f32 %v740, 0.0
    %v808 = vmax.f32 %v743, 0.0
    %v809 = vmax.f32 %v746, 0.0
    %v810 = vmax.f32 %v749, 0.0
    %v811 = vmax.f32 %v752, 0.0
    %v812 = vmax.f32 %v755, 0.0
    %v813 = vmax.f32 %v758, 0.0
    %v814 = vmax.f32 %v761, 0.0
    %v815 = vmax.f32 %v764, 0.0
    %v816 = vmax.f32 %v767, 0.0
    %v817 = vmax.f32 %v770, 0.0
    %v818 = vmax.f32 %v773, 0.0
    %v819 = vmax.f32 %v776, 0.0
    %v820 = vmax.f32 %v779, 0.0
    %v821 = vmax.f32 %v782, 0.0
    %v822 = vmax.f32 %v785, 0.0
    %v823 = vmax.f32 %v788, 0.0
    %v824 = vmax.f32 %v791, 0.0
    %825 = vmatpush.msra.mxu0 %v808
    %826 = vmatpush.msra.mxu0 %v807
    %827 = vmatpush.msra.mxu0 %v806
    %828 = vmatpush.msra.mxu0 %v805
    %829 = vmatpush.msra.mxu0 %v804
    %830 = vmatpush.msra.mxu0 %v803
    %831 = vmatpush.msra.mxu0 %v802
    %832 = vmatpush.msra.mxu0 %v801
    %833 = vmatpush.msra.mxu0 %v800
    %834 = vmatpush.msra.mxu0 %v799
    %835 = vmatpush.msra.mxu0 %v798
    %836 = vmatpush.msra.mxu0 %v797
    %837 = vmatpush.msra.mxu0 %v796
    %838 = vmatpush.msra.mxu0 %v795
    %839 = vmatpush.msra.mxu0 %v794
    %840 = vmatpush.msra.mxu0 %v793
    %841 = vmatmul.f32.gmra.mxu0 %v107
    %v842 = vpop.f32.mrf.mxu0
    %v843 = vadd.f32 %v552, %v842
    %844 = vdwg.mxu0
    %845 = vmatpush.msra.mxu0 %v824
    %846 = vmatpush.msra.mxu0 %v823
    %847 = vmatpush.msra.mxu0 %v822
    %848 = vmatpush.msra.mxu0 %v821
    %849 = vmatpush.msra.mxu0 %v820
    %850 = vmatpush.msra.mxu0 %v819
    %851 = vmatpush.msra.mxu0 %v818
    %852 = vmatpush.msra.mxu0 %v817
    %853 = vmatpush.msra.mxu0 %v816
    %854 = vmatpush.msra.mxu0 %v815
    %855 = vmatpush.msra.mxu0 %v814
    %856 = vmatpush.msra.mxu0 %v813
    %857 = vmatpush.msra.mxu0 %v812
    %858 = vmatpush.msra.mxu0 %v811
    %859 = vmatpush.msra.mxu0 %v810
    %860 = vmatpush.msra.mxu0 %v809
    %861 = vmatmul.f32.gmra.mxu0 %v108
    %v862 = vpop.f32.mrf.mxu0
    %v863 = vadd.f32 %v843, %v862
    %864 = vdwg.mxu0
    %v865 = vmul.f32 %v863, 0.05
    %v866 = vadd.f32 %v110, %v865
    %v867 = vmul.f32 %v863, 2.0
    %v868 = vmul.f32 %v866, %v866
    %v869 = vmul.f32 %v868, %v866
    %870 = vmatpush.msra.mxu0 0.0
    %871 = vmatpush.msra.mxu0 0.0
    %872 = vmatpush.msra.mxu0 0.0
    %873 = vmatpush.msra.mxu0 0.0
    %874 = vmatpush.msra.mxu0 0.0
    %875 = vmatpush.msra.mxu0 0.0
    %876 = vmatpush.msra.mxu0 0.0
    %877 = vmatpush.msra.mxu0 0.0
    %878 = vmatpush.msra.mxu0 0.0
    %879 = vmatpush.msra.mxu0 0.0
    %880 = vmatpush.msra.mxu0 0.0
    %881 = vmatpush.msra.mxu0 0.0
    %882 = vmatpush.msra.mxu0 %v867
    %883 = vmatpush.msra.mxu0 %v869
    %884 = vmatpush.msra.mxu0 %v868
    %885 = vmatpush.msra.mxu0 %v866
    %886 = vmatmul.f32.gmra.mxu0 %v116
    %v887 = vpop.f32.mrf.mxu0
    %v888 = vadd.f32 0.0, %v887
    %889 = vmatmul.f32.gmra.mxu0 %v119
    %v890 = vpop.f32.mrf.mxu0
    %v891 = vadd.f32 0.0, %v890
    %892 = vmatmul.f32.gmra.mxu0 %v122
    %v893 = vpop.f32.mrf.mxu0
    %v894 = vadd.f32 0.0, %v893
    %895 = vmatmul.f32.gmra.mxu0 %v125
    %v896 = vpop.f32.mrf.mxu0
    %v897 = vadd.f32 0.0, %v896
    %898 = vmatmul.f32.gmra.mxu0 %v128
    %v899 = vpop.f32.mrf.mxu0
    %v900 = vadd.f32 0.0, %v899
    %901 = vmatmul.f32.gmra.mxu0 %v131
    %v902 = vpop.f32.mrf.mxu0
    %v903 = vadd.f32 0.0, %v902
    %904 = vmatmul.f32.gmra.mxu0 %v134
    %v905 = vpop.f32.mrf.mxu0
    %v906 = vadd.f32 0.0, %v905
    %907 = vmatmul.f32.gmra.mxu0 %v137
    %v908 = vpop.f32.mrf.mxu0
    %v909 = vadd.f32 0.0, %v908
    %910 = vmatmul.f32.gmra.mxu0 %v140
    %v911 = vpop.f32.mrf.mxu0
    %v912 = vadd.f32 0.0, %v911
    %913 = vmatmul.f32.gmra.mxu0 %v143
    %v914 = vpop.f32.mrf.mxu0
    %v915 = vadd.f32 0.0, %v914
    %916 = vmatmul.f32.gmra.mxu0 %v146
    %v917 = vpop.f32.mrf.mxu0
    %v918 = vadd.f32 0.0, %v917
    %919 = vmatmul.f32.gmra.mxu0 %v149
    %v920 = vpop.f32.mrf.mxu0
    %v921 = vadd.f32 0.0, %v920
    %922 = vmatmul.f32.gmra.mxu0 %v152
    %v923 = vpop.f32.mrf.mxu0
    %v924 = vadd.f32 0.0, %v923
    %925 = vmatmul.f32.gmra.mxu0 %v155
    %v926 = vpop.f32.mrf.mxu0
    %v927 = vadd.f32 0.0, %v926
    %928 = vmatmul.f32.gmra.mxu0 %v158
    %v929 = vpop.f32.mrf.mxu0
    %v930 = vadd.f32 0.0, %v929
    %931 = vmatmul.f32.gmra.mxu0 %v161
    %v932 = vpop.f32.mrf.mxu0
    %v933 = vadd.f32 0.0, %v932
    %934 = vdwg.mxu0
    %v935 = vmax.f32 %v888, 0.0
    %v936 = vmax.f32 %v891, 0.0
    %v937 = vmax.f32 %v894, 0.0
    %v938 = vmax.f32 %v897, 0.0
    %v939 = vmax.f32 %v900, 0.0
    %v940 = vmax.f32 %v903, 0.0
    %v941 = vmax.f32 %v906, 0.0
    %v942 = vmax.f32 %v909, 0.0
    %v943 = vmax.f32 %v912, 0.0
    %v944 = vmax.f32 %v915, 0.0
    %v945 = vmax.f32 %v918, 0.0
    %v946 = vmax.f32 %v921, 0.0
    %v947 = vmax.f32 %v924, 0.0
    %v948 = vmax.f32 %v927, 0.0
    %v949 = vmax.f32 %v930, 0.0
    %v950 = vmax.f32 %v933, 0.0
    %951 = vmatpush.msra.mxu0 %v950
    %952 = vmatpush.msra.mxu0 %v949
    %953 = vmatpush.msra.mxu0 %v948
    %954 = vmatpush.msra.mxu0 %v947
    %955 = vmatpush.msra.mxu0 %v946
    %956 = vmatpush.msra.mxu0 %v945
    %957 = vmatpush.msra.mxu0 %v944
    %958 = vmatpush.msra.mxu0 %v943
    %959 = vmatpush.msra.mxu0 %v942
    %960 = vmatpush.msra.mxu0 %v941
    %961 = vmatpush.msra.mxu0 %v940
    %962 = vmatpush.msra.mxu0 %v939
    %963 = vmatpush.msra.mxu0 %v938
    %964 = vmatpush.msra.mxu0 %v937
    %965 = vmatpush.msra.mxu0 %v936
    %966 = vmatpush.msra.mxu0 %v935
    %967 = vmatmul.f32.gmra.mxu0 %v43
    %v968 = vpop.f32.mrf.mxu0
    %v969 = vadd.f32 %v247, %v968
    %970 = vmatmul.f32.gmra.mxu0 %v44
    %v971 = vpop.f32.mrf.mxu0
    %v972 = vadd.f32 %v252, %v971
    %973 = vmatmul.f32.gmra.mxu0 %v45
    %v974 = vpop.f32.mrf.mxu0
    %v975 = vadd.f32 %v257, %v974
    %976 = vmatmul.f32.gmra.mxu0 %v46
    %v977 = vpop.f32.mrf.mxu0
    %v978 = vadd.f32 %v262, %v977
    %979 = vmatmul.f32.gmra.mxu0 %v47
    %v980 = vpop.f32.mrf.mxu0
    %v981 = vadd.f32 %v267, %v980
    %982 = vmatmul.f32.gmra.mxu0 %v48
    %v983 = vpop.f32.mrf.mxu0
    %v984 = vadd.f32 %v272, %v983
    %985 = vmatmul.f32.gmra.mxu0 %v49
    %v986 = vpop.f32.mrf.mxu0
    %v987 = vadd.f32 %v277, %v986
    %988 = vmatmul.f32.gmra.mxu0 %v50
    %v989 = vpop.f32.mrf.mxu0
    %v990 = vadd.f32 %v282, %v989
    %991 = vmatmul.f32.gmra.mxu0 %v51
    %v992 = vpop.f32.mrf.mxu0
    %v993 = vadd.f32 %v287, %v992
    %994 = vmatmul.f32.gmra.mxu0 %v52
    %v995 = vpop.f32.mrf.mxu0
    %v996 = vadd.f32 %v292, %v995
    %997 = vmatmul.f32.gmra.mxu0 %v53
    %v998 = vpop.f32.mrf.mxu0
    %v999 = vadd.f32 %v297, %v998
    %1000 = vmatmul.f32.gmra.mxu0 %v54
    %v1001 = vpop.f32.mrf.mxu0
    %v1002 = vadd.f32 %v302, %v1001
    %1003 = vmatmul.f32.gmra.mxu0 %v55
    %v1004 = vpop.f32.mrf.mxu0
    %v1005 = vadd.f32 %v307, %v1004
    %1006 = vmatmul.f32.gmra.mxu0 %v56
    %v1007 = vpop.f32.mrf.mxu0
    %v1008 = vadd.f32 %v312, %v1007
    %1009 = vmatmul.f32.gmra.mxu0 %v57
    %v1010 = vpop.f32.mrf.mxu0
    %v1011 = vadd.f32 %v317, %v1010
    %1012 = vmatmul.f32.gmra.mxu0 %v58
    %v1013 = vpop.f32.mrf.mxu0
    %v1014 = vadd.f32 %v322, %v1013
    %1015 = vmatmul.f32.gmra.mxu0 %v59
    %v1016 = vpop.f32.mrf.mxu0
    %v1017 = vadd.f32 %v327, %v1016
    %1018 = vmatmul.f32.gmra.mxu0 %v60
    %v1019 = vpop.f32.mrf.mxu0
    %v1020 = vadd.f32 %v332, %v1019
    %1021 = vmatmul.f32.gmra.mxu0 %v61
    %v1022 = vpop.f32.mrf.mxu0
    %v1023 = vadd.f32 %v337, %v1022
    %1024 = vmatmul.f32.gmra.mxu0 %v62
    %v1025 = vpop.f32.mrf.mxu0
    %v1026 = vadd.f32 %v342, %v1025
    %1027 = vmatmul.f32.gmra.mxu0 %v63
    %v1028 = vpop.f32.mrf.mxu0
    %v1029 = vadd.f32 %v347, %v1028
    %1030 = vmatmul.f32.gmra.mxu0 %v64
    %v1031 = vpop.f32.mrf.mxu0
    %v1032 = vadd.f32 %v352, %v1031
    %1033 = vmatmul.f32.gmra.mxu0 %v65
    %v1034 = vpop.f32.mrf.mxu0
    %v1035 = vadd.f32 %v357, %v1034
    %1036 = vmatmul.f32.gmra.mxu0 %v66
    %v1037 = vpop.f32.mrf.mxu0
    %v1038 = vadd.f32 %v362, %v1037
    %1039 = vmatmul.f32.gmra.mxu0 %v67
    %v1040 = vpop.f32.mrf.mxu0
    %v1041 = vadd.f32 %v367, %v1040
    %1042 = vmatmul.f32.gmra.mxu0 %v68
    %v1043 = vpop.f32.mrf.mxu0
    %v1044 = vadd.f32 %v372, %v1043
    %1045 = vmatmul.f32.gmra.mxu0 %v69
    %v1046 = vpop.f32.mrf.mxu0
    %v1047 = vadd.f32 %v377, %v1046
    %1048 = vmatmul.f32.gmra.mxu0 %v70
    %v1049 = vpop.f32.mrf.mxu0
    %v1050 = vadd.f32 %v382, %v1049
    %1051 = vmatmul.f32.gmra.mxu0 %v71
    %v1052 = vpop.f32.mrf.mxu0
    %v1053 = vadd.f32 %v387, %v1052
    %1054 = vmatmul.f32.gmra.mxu0 %v72
    %v1055 = vpop.f32.mrf.mxu0
    %v1056 = vadd.f32 %v392, %v1055
    %1057 = vmatmul.f32.gmra.mxu0 %v73
    %v1058 = vpop.f32.mrf.mxu0
    %v1059 = vadd.f32 %v397, %v1058
    %1060 = vmatmul.f32.gmra.mxu0 %v74
    %v1061 = vpop.f32.mrf.mxu0
    %v1062 = vadd.f32 %v402, %v1061
    %1063 = vdwg.mxu0
    %v1064 = vmax.f32 %v969, 0.0
    %v1065 = vmax.f32 %v972, 0.0
    %v1066 = vmax.f32 %v975, 0.0
    %v1067 = vmax.f32 %v978, 0.0
    %v1068 = vmax.f32 %v981, 0.0
    %v1069 = vmax.f32 %v984, 0.0
    %v1070 = vmax.f32 %v987, 0.0
    %v1071 = vmax.f32 %v990, 0.0
    %v1072 = vmax.f32 %v993, 0.0
    %v1073 = vmax.f32 %v996, 0.0
    %v1074 = vmax.f32 %v999, 0.0
    %v1075 = vmax.f32 %v1002, 0.0
    %v1076 = vmax.f32 %v1005, 0.0
    %v1077 = vmax.f32 %v1008, 0.0
    %v1078 = vmax.f32 %v1011, 0.0
    %v1079 = vmax.f32 %v1014, 0.0
    %v1080 = vmax.f32 %v1017, 0.0
    %v1081 = vmax.f32 %v1020, 0.0
    %v1082 = vmax.f32 %v1023, 0.0
    %v1083 = vmax.f32 %v1026, 0.0
    %v1084 = vmax.f32 %v1029, 0.0
    %v1085 = vmax.f32 %v1032, 0.0
    %v1086 = vmax.f32 %v1035, 0.0
    %v1087 = vmax.f32 %v1038, 0.0
    %v1088 = vmax.f32 %v1041, 0.0
    %v1089 = vmax.f32 %v1044, 0.0
    %v1090 = vmax.f32 %v1047, 0.0
    %v1091 = vmax.f32 %v1050, 0.0
    %v1092 = vmax.f32 %v1053, 0.0
    %v1093 = vmax.f32 %v1056, 0.0
    %v1094 = vmax.f32 %v1059, 0.0
    %v1095 = vmax.f32 %v1062, 0.0
    %1096 = vmatpush.msra.mxu0 %v1079
    %1097 = vmatpush.msra.mxu0 %v1078
    %1098 = vmatpush.msra.mxu0 %v1077
    %1099 = vmatpush.msra.mxu0 %v1076
    %1100 = vmatpush.msra.mxu0 %v1075
    %1101 = vmatpush.msra.mxu0 %v1074
    %1102 = vmatpush.msra.mxu0 %v1073
    %1103 = vmatpush.msra.mxu0 %v1072
    %1104 = vmatpush.msra.mxu0 %v1071
    %1105 = vmatpush.msra.mxu0 %v1070
    %1106 = vmatpush.msra.mxu0 %v1069
    %1107 = vmatpush.msra.mxu0 %v1068
    %1108 = vmatpush.msra.mxu0 %v1067
    %1109 = vmatpush.msra.mxu0 %v1066
    %1110 = vmatpush.msra.mxu0 %v1065
    %1111 = vmatpush.msra.mxu0 %v1064
    %1112 = vmatmul.f32.gmra.mxu0 %v107
    %v1113 = vpop.f32.mrf.mxu0
    %v1114 = vadd.f32 %v552, %v1113
    %1115 = vdwg.mxu0
    %1116 = vmatpush.msra.mxu0 %v1095
    %1117 = vmatpush.msra.mxu0 %v1094
    %1118 = vmatpush.msra.mxu0 %v1093
    %1119 = vmatpush.msra.mxu0 %v1092
    %1120 = vmatpush.msra.mxu0 %v1091
    %1121 = vmatpush.msra.mxu0 %v1090
    %1122 = vmatpush.msra.mxu0 %v1089
    %1123 = vmatpush.msra.mxu0 %v1088
    %1124 = vmatpush.msra.mxu0 %v1087
    %1125 = vmatpush.msra.mxu0 %v1086
    %1126 = vmatpush.msra.mxu0 %v1085
    %1127 = vmatpush.msra.mxu0 %v1084
    %1128 = vmatpush.msra.mxu0 %v1083
    %1129 = vmatpush.msra.mxu0 %v1082
    %1130 = vmatpush.msra.mxu0 %v1081
    %1131 = vmatpush.msra.mxu0 %v1080
    %1132 = vmatmul.f32.gmra.mxu0 %v108
    %v1133 = vpop.f32.mrf.mxu0
    %v1134 = vadd.f32 %v1114, %v1133
    %1135 = vdwg.mxu0
    %v1136 = vmul.f32 %v1134, 0.1
    %v1137 = vadd.f32 %v110, %v1136
    %v1138 = vmul.f32 %v1137, %v1137
    %v1139 = vmul.f32 %v1138, %v1137
    %1140 = vmatpush.msra.mxu0 0.0
    %1141 = vmatpush.msra.mxu0 0.0
    %1142 = vmatpush.msra.mxu0 0.0
    %1143 = vmatpush.msra.mxu0 0.0
    %1144 = vmatpush.msra.mxu0 0.0
    %1145 = vmatpush.msra.mxu0 0.0
    %1146 = vmatpush.msra.mxu0 0.0
    %1147 = vmatpush.msra.mxu0 0.0
    %1148 = vmatpush.msra.mxu0 0.0
    %1149 = vmatpush.msra.mxu0 0.0
    %1150 = vmatpush.msra.mxu0 0.0
    %1151 = vmatpush.msra.mxu0 0.0
    %1152 = vmatpush.msra.mxu0 %v1134
    %1153 = vmatpush.msra.mxu0 %v1139
    %1154 = vmatpush.msra.mxu0 %v1138
    %1155 = vmatpush.msra.mxu0 %v1137
    %1156 = vmatmul.f32.gmra.mxu0 %v116
    %v1157 = vpop.f32.mrf.mxu0
    %v1158 = vadd.f32 0.0, %v1157
    %1159 = vmatmul.f32.gmra.mxu0 %v119
    %v1160 = vpop.f32.mrf.mxu0
    %v1161 = vadd.f32 0.0, %v1160
    %1162 = vmatmul.f32.gmra.mxu0 %v122
    %v1163 = vpop.f32.mrf.mxu0
    %v1164 = vadd.f32 0.0, %v1163
    %1165 = vmatmul.f32.gmra.mxu0 %v125
    %v1166 = vpop.f32.mrf.mxu0
    %v1167 = vadd.f32 0.0, %v1166
    %1168 = vmatmul.f32.gmra.mxu0 %v128
    %v1169 = vpop.f32.mrf.mxu0
    %v1170 = vadd.f32 0.0, %v1169
    %1171 = vmatmul.f32.gmra.mxu0 %v131
    %v1172 = vpop.f32.mrf.mxu0
    %v1173 = vadd.f32 0.0, %v1172
    %1174 = vmatmul.f32.gmra.mxu0 %v134
    %v1175 = vpop.f32.mrf.mxu0
    %v1176 = vadd.f32 0.0, %v1175
    %1177 = vmatmul.f32.gmra.mxu0 %v137
    %v1178 = vpop.f32.mrf.mxu0
    %v1179 = vadd.f32 0.0, %v1178
    %1180 = vmatmul.f32.gmra.mxu0 %v140
    %v1181 = vpop.f32.mrf.mxu0
    %v1182 = vadd.f32 0.0, %v1181
    %1183 = vmatmul.f32.gmra.mxu0 %v143
    %v1184 = vpop.f32.mrf.mxu0
    %v1185 = vadd.f32 0.0, %v1184
    %1186 = vmatmul.f32.gmra.mxu0 %v146
    %v1187 = vpop.f32.mrf.mxu0
    %v1188 = vadd.f32 0.0, %v1187
    %1189 = vmatmul.f32.gmra.mxu0 %v149
    %v1190 = vpop.f32.mrf.mxu0
    %v1191 = vadd.f32 0.0, %v1190
    %1192 = vmatmul.f32.gmra.mxu0 %v152
    %v1193 = vpop.f32.mrf.mxu0
    %v1194 = vadd.f32 0.0, %v1193
    %1195 = vmatmul.f32.gmra.mxu0 %v155
    %v1196 = vpop.f32.mrf.mxu0
    %v1197 = vadd.f32 0.0, %v1196
    %1198 = vmatmul.f32.gmra.mxu0 %v158
    %v1199 = vpop.f32.mrf.mxu0
    %v1200 = vadd.f32 0.0, %v1199
    %1201 = vmatmul.f32.gmra.mxu0 %v161
    %v1202 = vpop.f32.mrf.mxu0
    %v1203 = vadd.f32 0.0, %v1202
    %1204 = vdwg.mxu0
    %v1205 = vmax.f32 %v1158, 0.0
    %v1206 = vmax.f32 %v1161, 0.0
    %v1207 = vmax.f32 %v1164, 0.0
    %v1208 = vmax.f32 %v1167, 0.0
    %v1209 = vmax.f32 %v1170, 0.0
    %v1210 = vmax.f32 %v1173, 0.0
    %v1211 = vmax.f32 %v1176, 0.0
    %v1212 = vmax.f32 %v1179, 0.0
    %v1213 = vmax.f32 %v1182, 0.0
    %v1214 = vmax.f32 %v1185, 0.0
    %v1215 = vmax.f32 %v1188, 0.0
    %v1216 = vmax.f32 %v1191, 0.0
    %v1217 = vmax.f32 %v1194, 0.0
    %v1218 = vmax.f32 %v1197, 0.0
    %v1219 = vmax.f32 %v1200, 0.0
    %v1220 = vmax.f32 %v1203, 0.0
    %1221 = vmatpush.msra.mxu0 %v1220
    %1222 = vmatpush.msra.mxu0 %v1219
    %1223 = vmatpush.msra.mxu0 %v1218
    %1224 = vmatpush.msra.mxu0 %v1217
    %1225 = vmatpush.msra.mxu0 %v1216
    %1226 = vmatpush.msra.mxu0 %v1215
    %1227 = vmatpush.msra.mxu0 %v1214
    %1228 = vmatpush.msra.mxu0 %v1213
    %1229 = vmatpush.msra.mxu0 %v1212
    %1230 = vmatpush.msra.mxu0 %v1211
    %1231 = vmatpush.msra.mxu0 %v1210
    %1232 = vmatpush.msra.mxu0 %v1209
    %1233 = vmatpush.msra.mxu0 %v1208
    %1234 = vmatpush.msra.mxu0 %v1207
    %1235 = vmatpush.msra.mxu0 %v1206
    %1236 = vmatpush.msra.mxu0 %v1205
    %1237 = vmatmul.f32.gmra.mxu0 %v43
    %v1238 = vpop.f32.mrf.mxu0
    %v1239 = vadd.f32 %v247, %v1238
    %1240 = vmatmul.f32.gmra.mxu0 %v44
    %v1241 = vpop.f32.mrf.mxu0
    %v1242 = vadd.f32 %v252, %v1241
    %1243 = vmatmul.f32.gmra.mxu0 %v45
    %v1244 = vpop.f32.mrf.mxu0
    %v1245 = vadd.f32 %v257, %v1244
    %1246 = vmatmul.f32.gmra.mxu0 %v46
    %v1247 = vpop.f32.mrf.mxu0
    %v1248 = vadd.f32 %v262, %v1247
    %1249 = vmatmul.f32.gmra.mxu0 %v47
    %v1250 = vpop.f32.mrf.mxu0
    %v1251 = vadd.f32 %v267, %v1250
    %1252 = vmatmul.f32.gmra.mxu0 %v48
    %v1253 = vpop.f32.mrf.mxu0
    %v1254 = vadd.f32 %v272, %v1253
    %1255 = vmatmul.f32.gmra.mxu0 %v49
    %v1256 = vpop.f32.mrf.mxu0
    %v1257 = vadd.f32 %v277, %v1256
    %1258 = vmatmul.f32.gmra.mxu0 %v50
    %v1259 = vpop.f32.mrf.mxu0
    %v1260 = vadd.f32 %v282, %v1259
    %1261 = vmatmul.f32.gmra.mxu0 %v51
    %v1262 = vpop.f32.mrf.mxu0
    %v1263 = vadd.f32 %v287, %v1262
    %1264 = vmatmul.f32.gmra.mxu0 %v52
    %v1265 = vpop.f32.mrf.mxu0
    %v1266 = vadd.f32 %v292, %v1265
    %1267 = vmatmul.f32.gmra.mxu0 %v53
    %v1268 = vpop.f32.mrf.mxu0
    %v1269 = vadd.f32 %v297, %v1268
    %1270 = vmatmul.f32.gmra.mxu0 %v54
    %v1271 = vpop.f32.mrf.mxu0
    %v1272 = vadd.f32 %v302, %v1271
    %1273 = vmatmul.f32.gmra.mxu0 %v55
    %v1274 = vpop.f32.mrf.mxu0
    %v1275 = vadd.f32 %v307, %v1274
    %1276 = vmatmul.f32.gmra.mxu0 %v56
    %v1277 = vpop.f32.mrf.mxu0
    %v1278 = vadd.f32 %v312, %v1277
    %1279 = vmatmul.f32.gmra.mxu0 %v57
    %v1280 = vpop.f32.mrf.mxu0
    %v1281 = vadd.f32 %v317, %v1280
    %1282 = vmatmul.f32.gmra.mxu0 %v58
    %v1283 = vpop.f32.mrf.mxu0
    %v1284 = vadd.f32 %v322, %v1283
    %1285 = vmatmul.f32.gmra.mxu0 %v59
    %v1286 = vpop.f32.mrf.mxu0
    %v1287 = vadd.f32 %v327, %v1286
    %1288 = vmatmul.f32.gmra.mxu0 %v60
    %v1289 = vpop.f32.mrf.mxu0
    %v1290 = vadd.f32 %v332, %v1289
    %1291 = vmatmul.f32.gmra.mxu0 %v61
    %v1292 = vpop.f32.mrf.mxu0
    %v1293 = vadd.f32 %v337, %v1292
    %1294 = vmatmul.f32.gmra.mxu0 %v62
    %v1295 = vpop.f32.mrf.mxu0
    %v1296 = vadd.f32 %v342, %v1295
    %1297 = vmatmul.f32.gmra.mxu0 %v63
    %v1298 = vpop.f32.mrf.mxu0
    %v1299 = vadd.f32 %v347, %v1298
    %1300 = vmatmul.f32.gmra.mxu0 %v64
    %v1301 = vpop.f32.mrf.mxu0
    %v1302 = vadd.f32 %v352, %v1301
    %1303 = vmatmul.f32.gmra.mxu0 %v65
    %v1304 = vpop.f32.mrf.mxu0
    %v1305 = vadd.f32 %v357, %v1304
    %1306 = vmatmul.f32.gmra.mxu0 %v66
    %v1307 = vpop.f32.mrf.mxu0
    %v1308 = vadd.f32 %v362, %v1307
    %1309 = vmatmul.f32.gmra.mxu0 %v67
    %v1310 = vpop.f32.mrf.mxu0
    %v1311 = vadd.f32 %v367, %v1310
    %1312 = vmatmul.f32.gmra.mxu0 %v68
    %v1313 = vpop.f32.mrf.mxu0
    %v1314 = vadd.f32 %v372, %v1313
    %1315 = vmatmul.f32.gmra.mxu0 %v69
    %v1316 = vpop.f32.mrf.mxu0
    %v1317 = vadd.f32 %v377, %v1316
    %1318 = vmatmul.f32.gmra.mxu0 %v70
    %v1319 = vpop.f32.mrf.mxu0
    %v1320 = vadd.f32 %v382, %v1319
    %1321 = vmatmul.f32.gmra.mxu0 %v71
    %v1322 = vpop.f32.mrf.mxu0
    %v1323 = vadd.f32 %v387, %v1322
    %1324 = vmatmul.f32.gmra.mxu0 %v72
    %v1325 = vpop.f32.mrf.mxu0
    %v1326 = vadd.f32 %v392, %v1325
    %1327 = vmatmul.f32.gmra.mxu0 %v73
    %v1328 = vpop.f32.mrf.mxu0
    %v1329 = vadd.f32 %v397, %v1328
    %1330 = vmatmul.f32.gmra.mxu0 %v74
    %v1331 = vpop.f32.mrf.mxu0
    %v1332 = vadd.f32 %v402, %v1331
    %1333 = vdwg.mxu0
    %v1334 = vmax.f32 %v1239, 0.0
    %v1335 = vmax.f32 %v1242, 0.0
    %v1336 = vmax.f32 %v1245, 0.0
    %v1337 = vmax.f32 %v1248, 0.0
    %v1338 = vmax.f32 %v1251, 0.0
    %v1339 = vmax.f32 %v1254, 0.0
    %v1340 = vmax.f32 %v1257, 0.0
    %v1341 = vmax.f32 %v1260, 0.0
    %v1342 = vmax.f32 %v1263, 0.0
    %v1343 = vmax.f32 %v1266, 0.0
    %v1344 = vmax.f32 %v1269, 0.0
    %v1345 = vmax.f32 %v1272, 0.0
    %v1346 = vmax.f32 %v1275, 0.0
    %v1347 = vmax.f32 %v1278, 0.0
    %v1348 = vmax.f32 %v1281, 0.0
    %v1349 = vmax.f32 %v1284, 0.0
    %v1350 = vmax.f32 %v1287, 0.0
    %v1351 = vmax.f32 %v1290, 0.0
    %v1352 = vmax.f32 %v1293, 0.0
    %v1353 = vmax.f32 %v1296, 0.0
    %v1354 = vmax.f32 %v1299, 0.0
    %v1355 = vmax.f32 %v1302, 0.0
    %v1356 = vmax.f32 %v1305, 0.0
    %v1357 = vmax.f32 %v1308, 0.0
    %v1358 = vmax.f32 %v1311, 0.0
    %v1359 = vmax.f32 %v1314, 0.0
    %v1360 = vmax.f32 %v1317, 0.0
    %v1361 = vmax.f32 %v1320, 0.0
    %v1362 = vmax.f32 %v1323, 0.0
    %v1363 = vmax.f32 %v1326, 0.0
    %v1364 = vmax.f32 %v1329, 0.0
    %v1365 = vmax.f32 %v1332, 0.0
    %1366 = vmatpush.msra.mxu0 %v1349
    %1367 = vmatpush.msra.mxu0 %v1348
    %1368 = vmatpush.msra.mxu0 %v1347
    %1369 = vmatpush.msra.mxu0 %v1346
    %1370 = vmatpush.msra.mxu0 %v1345
    %1371 = vmatpush.msra.mxu0 %v1344
    %1372 = vmatpush.msra.mxu0 %v1343
    %1373 = vmatpush.msra.mxu0 %v1342
    %1374 = vmatpush.msra.mxu0 %v1341
    %1375 = vmatpush.msra.mxu0 %v1340
    %1376 = vmatpush.msra.mxu0 %v1339
    %1377 = vmatpush.msra.mxu0 %v1338
    %1378 = vmatpush.msra.mxu0 %v1337
    %1379 = vmatpush.msra.mxu0 %v1336
    %1380 = vmatpush.msra.mxu0 %v1335
    %1381 = vmatpush.msra.mxu0 %v1334
    %1382 = vmatmul.f32.gmra.mxu0 %v107
    %v1383 = vpop.f32.mrf.mxu0
    %v1384 = vadd.f32 %v552, %v1383
    %1385 = vdwg.mxu0
    %1386 = vmatpush.msra.mxu0 %v1365
    %1387 = vmatpush.msra.mxu0 %v1364
    %1388 = vmatpush.msra.mxu0 %v1363
    %1389 = vmatpush.msra.mxu0 %v1362
    %1390 = vmatpush.msra.mxu0 %v1361
    %1391 = vmatpush.msra.mxu0 %v1360
    %1392 = vmatpush.msra.mxu0 %v1359
    %1393 = vmatpush.msra.mxu0 %v1358
    %1394 = vmatpush.msra.mxu0 %v1357
    %1395 = vmatpush.msra.mxu0 %v1356
    %1396 = vmatpush.msra.mxu0 %v1355
    %1397 = vmatpush.msra.mxu0 %v1354
    %1398 = vmatpush.msra.mxu0 %v1353
    %1399 = vmatpush.msra.mxu0 %v1352
    %1400 = vmatpush.msra.mxu0 %v1351
    %1401 = vmatpush.msra.mxu0 %v1350
    %1402 = vmatmul.f32.gmra.mxu0 %v108
    %v1403 = vpop.f32.mrf.mxu0
    %v1404 = vadd.f32 %v1384, %v1403
    %1405 = vdwg.mxu0
    %v1406 = vadd.f32 %v863, %v1134
    %v1407 = vmul.f32 %v1406, 2.0
    %v1408 = vadd.f32 %v592, %v1407
    %v1409 = vadd.f32 %v1408, %v1404
    %v1410 = vmul.f32 %v1409, 0.016666668
    %v1411 = vadd.f32 %v110, %v1410
    %1412 = vst [vmem:[#allocation2] sm:$0xff] %v1411
    // Predicated region
    $region30: #{tpu_custom_call.1} parent=1 // pred_check
      _
    $region31: #{tpu_custom_call.1} parent=1 // pred_check_branch
      %1414 = sbr.rel (0) target = $region33
    $region32: #{tpu_custom_call.1} parent=1 // pred_region
      %1416 = vsyncadd [#allocation3], 0
      %s1418 = sshll.u32 [#allocation2], 4
      %s1419 = int_to_ptr.vmem [resolvable:$true] %s1418
      %s1420 = sshll.u32 %s7, 4
      %s1421 = int_to_ptr.hbm [resolvable:$true] %s1420
      %1423 = dma.vmem_to_hbm [thread:$0]  %s1419, 128, %s1421, [#allocation3]
    $region33: #{tpu_custom_call.1} parent=1 // pred_fallthru
      _
    // Predicated region
    $region34: #{tpu_custom_call.1} parent=1 // pred_check
      _
    $region35: #{tpu_custom_call.1} parent=1 // pred_check_branch
      %1425 = sbr.rel (0) target = $region37
    $region36: #{tpu_custom_call.1} parent=1 // pred_region
      %1427 = dma.done [#allocation3], 128
    $region37: #{tpu_custom_call.1} parent=1 // pred_fallthru
      _
    %1428 = vsyncpa [#allocation3], 1

</llo_original>
